<compile_context>
chip_gen: v7x
topology: tpu7x:2x2x1
jax: 0.10.0
libtpu: 0.0.40
codegen_flags: <defaults>
</compile_context>

<pallas_src>
import functools

import jax
import jax.numpy as jnp
from jax.experimental import pallas as pl
from jax.experimental.pallas import tpu as pltpu


NEG_SLOPE = 0.0001  # nn.LeakyReLU(0.0001)
LANE = 128          # TPU lane width
SUBLANE = 8         # f32 sublane width


def _round_up(x, m):
    return ((x + m - 1) // m) * m


def _leaky_relu(x):
    return jnp.where(x >= 0, x, NEG_SLOPE * x)


def _mlp_kernel(n_linear, out_pads, matmul_dtype, *refs):
    """refs = (x_ref, w0, ..., w{L-1}, bias_table_ref, out_ref).

    One batch tile per grid step.  Weights / bias table are VMEM-resident
    (constant index_map).  Each layer: MXU matmul with f32 accumulation, VPU
    bias add and LeakyReLU in f32; the last layer has no activation.
    """
    x_ref = refs[0]
    w_refs = refs[1:1 + n_linear]
    bias_ref = refs[1 + n_linear]
    out_ref = refs[-1]

    h = x_ref[...]  # f32 (tb, in_pad)
    for i in range(n_linear):
        w = w_refs[i][...]
        b = bias_ref[i:i + 1, :out_pads[i]]  # (1, out_pad_i), f32
        lhs = h if matmul_dtype == jnp.float32 else h.astype(matmul_dtype)
        acc = jnp.dot(lhs, w, preferred_element_type=jnp.float32)
        h = acc + b
        if i < n_linear - 1:
            h = _leaky_relu(h)
    out_ref[...] = h.astype(out_ref.dtype)


def dqn_forward(x, weights, biases, *, block_batch=256, matmul_dtype=jnp.float32):
    """x: [B, n_obs]; weights[i]: [in_i, out_i]; biases[i]: [out_i] (or [1, out_i])."""
    n_linear = len(weights)
    assert len(biases) == n_linear
    B, n_obs = x.shape
    n_actions = weights[-1].shape[1]
    matmul_dtype = jnp.dtype(matmul_dtype)

    # --- feature dims padded to lane multiples (128): lane-dense matmuls/stores.
    dims = [n_obs] + [w.shape[1] for w in weights]
    dims_pad = [_round_up(d, LANE) for d in dims]
    in_pad, out_pad = dims_pad[0], dims_pad[-1]

    # --- batch tiling: one block for small B; block_batch-row tiles otherwise
    #     (>= 2 grid steps so "parallel" shards across v7x's two TensorCores).
    block_batch = max(SUBLANE, _round_up(block_batch, SUBLANE))
    tb = _round_up(B, SUBLANE) if B <= block_batch else block_batch
    b_pad = _round_up(B, tb)
    n_blocks = b_pad // tb

    # --- x: pad feature dim (cheap) and batch only by the last-tile remainder.
    x_p = x.astype(jnp.float32)
    if b_pad != B or in_pad != n_obs:
        x_p = jnp.pad(x_p, ((0, b_pad - B), (0, in_pad - n_obs)))

    # --- weights zero-padded (exact math); stored in HBM in matmul_dtype
    #     (bf16 halves the one-time weight DMA and resident VMEM).
    w_pads = []
    for i, w in enumerate(weights):
        wp = w.astype(matmul_dtype)
        pk, pn = dims_pad[i] - w.shape[0], dims_pad[i + 1] - w.shape[1]
        if pk or pn:
            wp = jnp.pad(wp, ((0, pk), (0, pn)))
        w_pads.append(wp)

    # --- all biases packed into one [L, max_width] f32 table (one DMA).
    max_out = max(dims_pad[1:])
    b_rows = []
    for b in biases:
        bv = jnp.reshape(b, (-1,)).astype(jnp.float32)
        b_rows.append(jnp.pad(bv, (0, max_out - bv.shape[0])))
    b_stack = jnp.stack(b_rows, axis=0)

    # --- VMEM budget: resident params (x2 upper bound in case single-buffering
    #     is unavailable) + double-buffered x/out tiles + headroom; capped at
    #     ~80% of physical VMEM (v7x-safe fallback if the query fails).
    w_itemsize = jnp.dtype(matmul_dtype).itemsize
    resident = sum(int(wp.size) * w_itemsize for wp in w_pads) + int(b_stack.size) * 4
    streamed = 2 * tb * (in_pad + out_pad) * 4
    try:
        phys_vmem = int(pltpu.get_tpu_info().vmem_capacity_bytes)
    except Exception:
        phys_vmem = 64 << 20  # v7x per-TC worst case
    vmem_cap = int(phys_vmem * 0.8)
    vmem_limit = min(max(2 * resident + streamed + (8 << 20), 16 << 20), vmem_cap)
    # TODO(synk): add an N-panel weight-streaming fallback (second "arbitrary"
    # grid axis) for very wide DQNs whose resident params exceed ~60% of VMEM.

    flops = 2 * b_pad * sum(dims_pad[i] * dims_pad[i + 1] for i in range(n_linear))
    bytes_accessed = int(
        x_p.size * 4 + resident + b_pad * out_pad * 4
    )

    kernel = functools.partial(
        _mlp_kernel, n_linear, tuple(dims_pad[1:]), matmul_dtype
    )

    def _call(single_buffer_params):
        def resident_spec(shape):
            if single_buffer_params:
                # Constant (0,0) blocks don't need double buffers.
                return pl.BlockSpec(shape, lambda i: (0, 0),
                                    pipeline_mode=pl.Buffered(1))
            return pl.BlockSpec(shape, lambda i: (0, 0))

        in_specs = [pl.BlockSpec((tb, in_pad), lambda i: (i, 0))]
        in_specs += [resident_spec(wp.shape) for wp in w_pads]
        in_specs.append(resident_spec(b_stack.shape))
        out_specs = pl.BlockSpec((tb, out_pad), lambda i: (i, 0))

        return pl.pallas_call(
            kernel,
            out_shape=jax.ShapeDtypeStruct((b_pad, out_pad), jnp.float32),
            grid=(n_blocks,),
            in_specs=in_specs,
            out_specs=out_specs,
            compiler_params=pltpu.CompilerParams(
                dimension_semantics=("parallel",),
                vmem_limit_bytes=int(vmem_limit),
            ),
            cost_estimate=pl.CostEstimate(
                flops=int(flops), transcendentals=0,
                bytes_accessed=int(bytes_accessed),
            ),
        )(x_p, *w_pads, b_stack)

    single_buffer = hasattr(pl, "Buffered")
    try:
        out_p = _call(single_buffer)
    except Exception:
        if not single_buffer:
            raise
        out_p = _call(False)  # fall back to default double-buffered params

    # slice off batch padding and zero-padded action columns
    return out_p[:B, :n_actions]


def init_dqn_params(key, n_observations, n_actions, n_hidden_layers, nodes_per_layer):
    """Deterministic init matching init_weights: xavier_uniform weights, bias=0.01."""
    dims = [n_observations] + [nodes_per_layer] * (n_hidden_layers + 1) + [n_actions]
    weights, biases = [], []
    for i in range(len(dims) - 1):
        fan_in, fan_out = dims[i], dims[i + 1]
        key, sub = jax.random.split(key)
        bound = (6.0 / (fan_in + fan_out)) ** 0.5
        w = jax.random.uniform(
            sub, (fan_in, fan_out), minval=-bound, maxval=bound, dtype=jnp.float32
        )
        b = jnp.full((fan_out,), 0.01, dtype=jnp.float32)
        weights.append(w)
        biases.append(b)
    return weights, biases


def dqn_forward_ref(x, weights, biases):
    """Pure-JAX reference (full-f32 matmuls) for correctness check."""
    h = x
    n = len(weights)
    for i, (w, b) in enumerate(zip(weights, biases)):
        h = jnp.dot(h, w, precision=jax.lax.Precision.HIGHEST) + b
        if i < n - 1:
            h = _leaky_relu(h)
    return h


if __name__ == "__main__":
    # Small shapes consistent with the module's constructor.
    B = 32
    n_observations = 16
    n_actions = 4
    n_hidden_layers = 2
    nodes_per_layer = 32

    key = jax.random.PRNGKey(0)
    key, xkey = jax.random.split(key)
    x = jax.random.normal(xkey, (B, n_observations), dtype=jnp.float32)

    weights, biases = init_dqn_params(
        key, n_observations, n_actions, n_hidden_layers, nodes_per_layer
    )

    ref = dqn_forward_ref(x, weights, biases)

    # f32-operand path (DEFAULT precision, one MXU pass), single grid step.
    out_f32 = jax.block_until_ready(dqn_forward(x, weights, biases))
    assert out_f32.shape == (B, n_actions)
    assert jnp.allclose(out_f32, ref, atol=3e-2, rtol=3e-2)

    # bf16-operand / f32-accumulate path (v6e/v7x MXU fast path).
    # Not PyTorch-fp32-equivalent: per-layer bf16 operand rounding compounds.
    out_bf16 = jax.block_until_ready(
        dqn_forward(x, weights, biases, matmul_dtype=jnp.bfloat16)
    )
    assert out_bf16.shape == (B, n_actions)
    assert jnp.allclose(out_bf16, ref, atol=1e-1, rtol=1e-1)

    print("KERNEL_OK")
</pallas_src>

<mosaic_0001>
module attributes {stable_mosaic.version = 11 : i64} {
  func.func @_mlp_kernel(%arg0: i32, %arg1: memref<32x128xf32, #tpu.memory_space<vmem>>, %arg2: memref<128x128xf32, #tpu.memory_space<vmem>>, %arg3: memref<128x128xf32, #tpu.memory_space<vmem>>, %arg4: memref<128x128xf32, #tpu.memory_space<vmem>>, %arg5: memref<128x128xf32, #tpu.memory_space<vmem>>, %arg6: memref<4x128xf32, #tpu.memory_space<vmem>>, %arg7: memref<32x128xf32, #tpu.memory_space<vmem>>) attributes {dimension_semantics = [#tpu.dimension_semantics<parallel>], iteration_bounds = array<i64: 1>, scalar_prefetch = 0 : i64, scratch_operands = 0 : i64, tpu.core_type = #tpu.core_type<tc>, window_params = [{transform_indices = @transform_0, window_bounds = array<i64: 32, 128>}, {pipeline_mode = #tpu.pipeline_mode<synchronous>, transform_indices = @transform_1, window_bounds = array<i64: 128, 128>}, {pipeline_mode = #tpu.pipeline_mode<synchronous>, transform_indices = @transform_2, window_bounds = array<i64: 128, 128>}, {pipeline_mode = #tpu.pipeline_mode<synchronous>, transform_indices = @transform_3, window_bounds = array<i64: 128, 128>}, {pipeline_mode = #tpu.pipeline_mode<synchronous>, transform_indices = @transform_4, window_bounds = array<i64: 128, 128>}, {pipeline_mode = #tpu.pipeline_mode<synchronous>, transform_indices = @transform_5, window_bounds = array<i64: 4, 128>}, {transform_indices = @transform_6, window_bounds = array<i64: 32, 128>}]} {
    %c0 = arith.constant 0 : index
    %c0_0 = arith.constant 0 : index
    %0 = vector.load %arg1[%c0, %c0_0] : memref<32x128xf32, #tpu.memory_space<vmem>>, vector<32x128xf32>
    %c0_1 = arith.constant 0 : index
    %c0_2 = arith.constant 0 : index
    %1 = vector.load %arg2[%c0_1, %c0_2] : memref<128x128xf32, #tpu.memory_space<vmem>>, vector<128x128xf32>
    %c0_3 = arith.constant 0 : index
    %c0_4 = arith.constant 0 : index
    %2 = vector.load %arg6[%c0_3, %c0_4] : memref<4x128xf32, #tpu.memory_space<vmem>>, vector<1x128xf32>
    %cst = arith.constant dense<0.000000e+00> : vector<32x128xf32>
    %3 = tpu.matmul %0, %1, %cst {dimension_numbers = #tpu.dot_dimension_numbers<[1], [0], [0], [1], [0, 0, 1, 1], [], []>} : vector<32x128xf32>, vector<128x128xf32>, vector<32x128xf32> -> vector<32x128xf32>
    %4 = vector.broadcast %2 : vector<1x128xf32> to vector<32x128xf32>
    %5 = arith.addf %3, %4 : vector<32x128xf32>
    %cst_5 = arith.constant 0.000000e+00 : f32
    %6 = vector.broadcast %cst_5 : f32 to vector<32x128xf32>
    %7 = arith.cmpf oge, %5, %6 : vector<32x128xf32>
    %cst_6 = arith.constant 9.99999974E-5 : f32
    %8 = vector.broadcast %cst_6 : f32 to vector<32x128xf32>
    %9 = arith.mulf %8, %5 : vector<32x128xf32>
    %10 = arith.select %7, %5, %9 : vector<32x128xi1>, vector<32x128xf32>
    %c0_7 = arith.constant 0 : index
    %c0_8 = arith.constant 0 : index
    %11 = vector.load %arg3[%c0_7, %c0_8] : memref<128x128xf32, #tpu.memory_space<vmem>>, vector<128x128xf32>
    %c1 = arith.constant 1 : index
    %c0_9 = arith.constant 0 : index
    %12 = vector.load %arg6[%c1, %c0_9] : memref<4x128xf32, #tpu.memory_space<vmem>>, vector<1x128xf32>
    %cst_10 = arith.constant dense<0.000000e+00> : vector<32x128xf32>
    %13 = tpu.matmul %10, %11, %cst_10 {dimension_numbers = #tpu.dot_dimension_numbers<[1], [0], [0], [1], [0, 0, 1, 1], [], []>} : vector<32x128xf32>, vector<128x128xf32>, vector<32x128xf32> -> vector<32x128xf32>
    %14 = vector.broadcast %12 : vector<1x128xf32> to vector<32x128xf32>
    %15 = arith.addf %13, %14 : vector<32x128xf32>
    %cst_11 = arith.constant 0.000000e+00 : f32
    %16 = vector.broadcast %cst_11 : f32 to vector<32x128xf32>
    %17 = arith.cmpf oge, %15, %16 : vector<32x128xf32>
    %cst_12 = arith.constant 9.99999974E-5 : f32
    %18 = vector.broadcast %cst_12 : f32 to vector<32x128xf32>
    %19 = arith.mulf %18, %15 : vector<32x128xf32>
    %20 = arith.select %17, %15, %19 : vector<32x128xi1>, vector<32x128xf32>
    %c0_13 = arith.constant 0 : index
    %c0_14 = arith.constant 0 : index
    %21 = vector.load %arg4[%c0_13, %c0_14] : memref<128x128xf32, #tpu.memory_space<vmem>>, vector<128x128xf32>
    %c2 = arith.constant 2 : index
    %c0_15 = arith.constant 0 : index
    %22 = vector.load %arg6[%c2, %c0_15] : memref<4x128xf32, #tpu.memory_space<vmem>>, vector<1x128xf32>
    %cst_16 = arith.constant dense<0.000000e+00> : vector<32x128xf32>
    %23 = tpu.matmul %20, %21, %cst_16 {dimension_numbers = #tpu.dot_dimension_numbers<[1], [0], [0], [1], [0, 0, 1, 1], [], []>} : vector<32x128xf32>, vector<128x128xf32>, vector<32x128xf32> -> vector<32x128xf32>
    %24 = vector.broadcast %22 : vector<1x128xf32> to vector<32x128xf32>
    %25 = arith.addf %23, %24 : vector<32x128xf32>
    %cst_17 = arith.constant 0.000000e+00 : f32
    %26 = vector.broadcast %cst_17 : f32 to vector<32x128xf32>
    %27 = arith.cmpf oge, %25, %26 : vector<32x128xf32>
    %cst_18 = arith.constant 9.99999974E-5 : f32
    %28 = vector.broadcast %cst_18 : f32 to vector<32x128xf32>
    %29 = arith.mulf %28, %25 : vector<32x128xf32>
    %30 = arith.select %27, %25, %29 : vector<32x128xi1>, vector<32x128xf32>
    %c0_19 = arith.constant 0 : index
    %c0_20 = arith.constant 0 : index
    %31 = vector.load %arg5[%c0_19, %c0_20] : memref<128x128xf32, #tpu.memory_space<vmem>>, vector<128x128xf32>
    %c3 = arith.constant 3 : index
    %c0_21 = arith.constant 0 : index
    %32 = vector.load %arg6[%c3, %c0_21] : memref<4x128xf32, #tpu.memory_space<vmem>>, vector<1x128xf32>
    %cst_22 = arith.constant dense<0.000000e+00> : vector<32x128xf32>
    %33 = tpu.matmul %30, %31, %cst_22 {dimension_numbers = #tpu.dot_dimension_numbers<[1], [0], [0], [1], [0, 0, 1, 1], [], []>} : vector<32x128xf32>, vector<128x128xf32>, vector<32x128xf32> -> vector<32x128xf32>
    %34 = vector.broadcast %32 : vector<1x128xf32> to vector<32x128xf32>
    %35 = arith.addf %33, %34 : vector<32x128xf32>
    %c0_23 = arith.constant 0 : index
    %c0_24 = arith.constant 0 : index
    %36 = vector.load %arg7[%c0_23, %c0_24] : memref<32x128xf32, #tpu.memory_space<vmem>>, vector<32x128xf32>
    tpu.vector_store %arg7[%c0_23, %c0_24], %35 {strides = array<i32>} : memref<32x128xf32, #tpu.memory_space<vmem>>, vector<32x128xf32>,
    return
  }
  func.func @transform_0(%arg0: i32) -> (i32, i32) {
    %c0_i32 = arith.constant 0 : i32
    %c0_i32_0 = arith.constant 0 : i32
    return %arg0, %c0_i32 : i32, i32
  }
  func.func @transform_1(%arg0: i32) -> (i32, i32) {
    %c0_i32 = arith.constant 0 : i32
    %c0_i32_0 = arith.constant 0 : i32
    %c0_i32_1 = arith.constant 0 : i32
    return %c0_i32, %c0_i32_0 : i32, i32
  }
  func.func @transform_2(%arg0: i32) -> (i32, i32) {
    %c0_i32 = arith.constant 0 : i32
    %c0_i32_0 = arith.constant 0 : i32
    %c0_i32_1 = arith.constant 0 : i32
    return %c0_i32, %c0_i32_0 : i32, i32
  }
  func.func @transform_3(%arg0: i32) -> (i32, i32) {
    %c0_i32 = arith.constant 0 : i32
    %c0_i32_0 = arith.constant 0 : i32
    %c0_i32_1 = arith.constant 0 : i32
    return %c0_i32, %c0_i32_0 : i32, i32
  }
  func.func @transform_4(%arg0: i32) -> (i32, i32) {
    %c0_i32 = arith.constant 0 : i32
    %c0_i32_0 = arith.constant 0 : i32
    %c0_i32_1 = arith.constant 0 : i32
    return %c0_i32, %c0_i32_0 : i32, i32
  }
  func.func @transform_5(%arg0: i32) -> (i32, i32) {
    %c0_i32 = arith.constant 0 : i32
    %c0_i32_0 = arith.constant 0 : i32
    %c0_i32_1 = arith.constant 0 : i32
    return %c0_i32, %c0_i32_0 : i32, i32
  }
  func.func @transform_6(%arg0: i32) -> (i32, i32) {
    %c0_i32 = arith.constant 0 : i32
    %c0_i32_0 = arith.constant 0 : i32
    return %arg0, %c0_i32 : i32, i32
  }
}

module attributes {stable_mosaic.version = 11 : i64} {
  func.func @_mlp_kernel(%arg0: i32, %arg1: memref<32x128xf32, #tpu.memory_space<vmem>>, %arg2: memref<128x128xf32, #tpu.memory_space<vmem>>, %arg3: memref<128x128xf32, #tpu.memory_space<vmem>>, %arg4: memref<128x128xf32, #tpu.memory_space<vmem>>, %arg5: memref<128x128xf32, #tpu.memory_space<vmem>>, %arg6: memref<4x128xf32, #tpu.memory_space<vmem>>, %arg7: memref<32x128xf32, #tpu.memory_space<vmem>>) attributes {dimension_semantics = [#tpu.dimension_semantics<parallel>], iteration_bounds = array<i64: 1>, scalar_prefetch = 0 : i64, scratch_operands = 0 : i64, tpu.core_type = #tpu.core_type<tc>, window_params = [{transform_indices = @transform_0, window_bounds = array<i64: 32, 128>}, {pipeline_mode = #tpu.pipeline_mode<synchronous>, transform_indices = @transform_1, window_bounds = array<i64: 128, 128>}, {pipeline_mode = #tpu.pipeline_mode<synchronous>, transform_indices = @transform_2, window_bounds = array<i64: 128, 128>}, {pipeline_mode = #tpu.pipeline_mode<synchronous>, transform_indices = @transform_3, window_bounds = array<i64: 128, 128>}, {pipeline_mode = #tpu.pipeline_mode<synchronous>, transform_indices = @transform_4, window_bounds = array<i64: 128, 128>}, {pipeline_mode = #tpu.pipeline_mode<synchronous>, transform_indices = @transform_5, window_bounds = array<i64: 4, 128>}, {transform_indices = @transform_6, window_bounds = array<i64: 32, 128>}]} {
    %c0 = arith.constant 0 : index
    %c0_0 = arith.constant 0 : index
    %0 = vector.load %arg1[%c0, %c0_0] : memref<32x128xf32, #tpu.memory_space<vmem>>, vector<32x128xf32>
    %c0_1 = arith.constant 0 : index
    %c0_2 = arith.constant 0 : index
    %1 = vector.load %arg2[%c0_1, %c0_2] : memref<128x128xf32, #tpu.memory_space<vmem>>, vector<128x128xf32>
    %c0_3 = arith.constant 0 : index
    %c0_4 = arith.constant 0 : index
    %2 = vector.load %arg6[%c0_3, %c0_4] : memref<4x128xf32, #tpu.memory_space<vmem>>, vector<1x128xf32>
    %cst = arith.constant dense<0.000000e+00> : vector<32x128xf32>
    %3 = tpu.matmul %0, %1, %cst {dimension_numbers = #tpu.dot_dimension_numbers<[1], [0], [0], [1], [0, 0, 1, 1], [], []>} : vector<32x128xf32>, vector<128x128xf32>, vector<32x128xf32> -> vector<32x128xf32>
    %4 = vector.broadcast %2 : vector<1x128xf32> to vector<32x128xf32>
    %5 = arith.addf %3, %4 : vector<32x128xf32>
    %cst_5 = arith.constant 0.000000e+00 : f32
    %6 = vector.broadcast %cst_5 : f32 to vector<32x128xf32>
    %7 = arith.cmpf oge, %5, %6 : vector<32x128xf32>
    %cst_6 = arith.constant 9.99999974E-5 : f32
    %8 = vector.broadcast %cst_6 : f32 to vector<32x128xf32>
    %9 = arith.mulf %8, %5 : vector<32x128xf32>
    %10 = arith.select %7, %5, %9 : vector<32x128xi1>, vector<32x128xf32>
    %c0_7 = arith.constant 0 : index
    %c0_8 = arith.constant 0 : index
    %11 = vector.load %arg3[%c0_7, %c0_8] : memref<128x128xf32, #tpu.memory_space<vmem>>, vector<128x128xf32>
    %c1 = arith.constant 1 : index
    %c0_9 = arith.constant 0 : index
    %12 = vector.load %arg6[%c1, %c0_9] : memref<4x128xf32, #tpu.memory_space<vmem>>, vector<1x128xf32>
    %cst_10 = arith.constant dense<0.000000e+00> : vector<32x128xf32>
    %13 = tpu.matmul %10, %11, %cst_10 {dimension_numbers = #tpu.dot_dimension_numbers<[1], [0], [0], [1], [0, 0, 1, 1], [], []>} : vector<32x128xf32>, vector<128x128xf32>, vector<32x128xf32> -> vector<32x128xf32>
    %14 = vector.broadcast %12 : vector<1x128xf32> to vector<32x128xf32>
    %15 = arith.addf %13, %14 : vector<32x128xf32>
    %cst_11 = arith.constant 0.000000e+00 : f32
    %16 = vector.broadcast %cst_11 : f32 to vector<32x128xf32>
    %17 = arith.cmpf oge, %15, %16 : vector<32x128xf32>
    %cst_12 = arith.constant 9.99999974E-5 : f32
    %18 = vector.broadcast %cst_12 : f32 to vector<32x128xf32>
    %19 = arith.mulf %18, %15 : vector<32x128xf32>
    %20 = arith.select %17, %15, %19 : vector<32x128xi1>, vector<32x128xf32>
    %c0_13 = arith.constant 0 : index
    %c0_14 = arith.constant 0 : index
    %21 = vector.load %arg4[%c0_13, %c0_14] : memref<128x128xf32, #tpu.memory_space<vmem>>, vector<128x128xf32>
    %c2 = arith.constant 2 : index
    %c0_15 = arith.constant 0 : index
    %22 = vector.load %arg6[%c2, %c0_15] : memref<4x128xf32, #tpu.memory_space<vmem>>, vector<1x128xf32>
    %cst_16 = arith.constant dense<0.000000e+00> : vector<32x128xf32>
    %23 = tpu.matmul %20, %21, %cst_16 {dimension_numbers = #tpu.dot_dimension_numbers<[1], [0], [0], [1], [0, 0, 1, 1], [], []>} : vector<32x128xf32>, vector<128x128xf32>, vector<32x128xf32> -> vector<32x128xf32>
    %24 = vector.broadcast %22 : vector<1x128xf32> to vector<32x128xf32>
    %25 = arith.addf %23, %24 : vector<32x128xf32>
    %cst_17 = arith.constant 0.000000e+00 : f32
    %26 = vector.broadcast %cst_17 : f32 to vector<32x128xf32>
    %27 = arith.cmpf oge, %25, %26 : vector<32x128xf32>
    %cst_18 = arith.constant 9.99999974E-5 : f32
    %28 = vector.broadcast %cst_18 : f32 to vector<32x128xf32>
    %29 = arith.mulf %28, %25 : vector<32x128xf32>
    %30 = arith.select %27, %25, %29 : vector<32x128xi1>, vector<32x128xf32>
    %c0_19 = arith.constant 0 : index
    %c0_20 = arith.constant 0 : index
    %31 = vector.load %arg5[%c0_19, %c0_20] : memref<128x128xf32, #tpu.memory_space<vmem>>, vector<128x128xf32>
    %c3 = arith.constant 3 : index
    %c0_21 = arith.constant 0 : index
    %32 = vector.load %arg6[%c3, %c0_21] : memref<4x128xf32, #tpu.memory_space<vmem>>, vector<1x128xf32>
    %cst_22 = arith.constant dense<0.000000e+00> : vector<32x128xf32>
    %33 = tpu.matmul %30, %31, %cst_22 {dimension_numbers = #tpu.dot_dimension_numbers<[1], [0], [0], [1], [0, 0, 1, 1], [], []>} : vector<32x128xf32>, vector<128x128xf32>, vector<32x128xf32> -> vector<32x128xf32>
    %34 = vector.broadcast %32 : vector<1x128xf32> to vector<32x128xf32>
    %35 = arith.addf %33, %34 : vector<32x128xf32>
    %c0_23 = arith.constant 0 : index
    %c0_24 = arith.constant 0 : index
    %36 = vector.load %arg7[%c0_23, %c0_24] : memref<32x128xf32, #tpu.memory_space<vmem>>, vector<32x128xf32>
    tpu.vector_store %arg7[%c0_23, %c0_24], %35 {strides = array<i32>} : memref<32x128xf32, #tpu.memory_space<vmem>>, vector<32x128xf32>,
    return
  }
  func.func @transform_0(%arg0: i32) -> (i32, i32) {
    %c0_i32 = arith.constant 0 : i32
    %c0_i32_0 = arith.constant 0 : i32
    return %arg0, %c0_i32 : i32, i32
  }
  func.func @transform_1(%arg0: i32) -> (i32, i32) {
    %c0_i32 = arith.constant 0 : i32
    %c0_i32_0 = arith.constant 0 : i32
    %c0_i32_1 = arith.constant 0 : i32
    return %c0_i32, %c0_i32_0 : i32, i32
  }
  func.func @transform_2(%arg0: i32) -> (i32, i32) {
    %c0_i32 = arith.constant 0 : i32
    %c0_i32_0 = arith.constant 0 : i32
    %c0_i32_1 = arith.constant 0 : i32
    return %c0_i32, %c0_i32_0 : i32, i32
  }
  func.func @transform_3(%arg0: i32) -> (i32, i32) {
    %c0_i32 = arith.constant 0 : i32
    %c0_i32_0 = arith.constant 0 : i32
    %c0_i32_1 = arith.constant 0 : i32
    return %c0_i32, %c0_i32_0 : i32, i32
  }
  func.func @transform_4(%arg0: i32) -> (i32, i32) {
    %c0_i32 = arith.constant 0 : i32
    %c0_i32_0 = arith.constant 0 : i32
    %c0_i32_1 = arith.constant 0 : i32
    return %c0_i32, %c0_i32_0 : i32, i32
  }
  func.func @transform_5(%arg0: i32) -> (i32, i32) {
    %c0_i32 = arith.constant 0 : i32
    %c0_i32_0 = arith.constant 0 : i32
    %c0_i32_1 = arith.constant 0 : i32
    return %c0_i32, %c0_i32_0 : i32, i32
  }
  func.func @transform_6(%arg0: i32) -> (i32, i32) {
    %c0_i32 = arith.constant 0 : i32
    %c0_i32_0 = arith.constant 0 : i32
    return %arg0, %c0_i32 : i32, i32
  }
}

</mosaic_0001>

<llo_original>
// kernel: tpu_custom_call.1
$region0: #{tpu_custom_call.1}
  #allocation0 [shape = 'u32[]', space=smem, size = 0x4, offset = 0x4, fixed_abs, tag = 'smem constant byte address 0x4 - core index']
  #allocation1 [shape = 'u32[144,128]{1,0:T(1,128)}', space=vmem, size = 0x12000, scoped, tag = 'internal scratch']
  %s0 = inlined_call_operand.hbm [shape: f32[32,128], index: 0, kind: input, shape index: {}]
  %s1 = inlined_call_operand.hbm [shape: f32[128,128], index: 1, kind: input, shape index: {}]
  %s2 = inlined_call_operand.hbm [shape: f32[128,128], index: 2, kind: input, shape index: {}]
  %s3 = inlined_call_operand.hbm [shape: f32[128,128], index: 3, kind: input, shape index: {}]
  %s4 = inlined_call_operand.hbm [shape: f32[128,128], index: 4, kind: input, shape index: {}]
  %s5 = inlined_call_operand.vmem [shape: f32[4,128], index: 5, kind: input, shape index: {}]
  %s6 = inlined_call_operand.hbm [shape: f32[32,128], index: 6, kind: output, shape index: {}]
  %s7 = sld [smem:[#allocation0]]
  $region54: #{tpu_custom_call.1} parent=0
    _
  %s9 = ssub.s32 1, %s7
  %s10 = scalar_select 0, %s9, %s7
  $region1: #{tpu_custom_call.1} parent=0
    #allocation2 [shape = 'u8[16384]{0}', space=vmem, size = 0x4000, scoped, tag = 'input window, operand 0, single buffered']
    #allocation3 [shape = 's32[1]{0}', space=sflag, size = 0x4, scoped, tag = 'scoped memory for tpu_custom_call.1']
    #allocation4 [shape = 's32[1]{0}', space=sflag, size = 0x4, scoped, tag = 'scoped memory for tpu_custom_call.1']
    #allocation5 [shape = 'u8[65536]{0}', space=vmem, size = 0x10000, scoped, tag = 'input window, operand 1, single buffered']
    #allocation6 [shape = 's32[1]{0}', space=sflag, size = 0x4, scoped, tag = 'scoped memory for tpu_custom_call.1']
    #allocation7 [shape = 'u8[65536]{0}', space=vmem, size = 0x10000, scoped, tag = 'input window, operand 2, single buffered']
    #allocation8 [shape = 'u8[65536]{0}', space=vmem, size = 0x10000, scoped, tag = 'input window, operand 3, single buffered']
    #allocation9 [shape = 's32[1]{0}', space=sflag, size = 0x4, scoped, tag = 'scoped memory for tpu_custom_call.1']
    #allocation10 [shape = 'u8[65536]{0}', space=vmem, size = 0x10000, scoped, tag = 'input window, operand 4, single buffered']
    #allocation11 [shape = 'u8[16384]{0}', space=vmem, size = 0x4000, scoped, tag = 'output window, operand 0, single buffered']
    %11 = vsyncpa [#allocation3], 0
    %12 = vsyncpa [#allocation6], 0
    %13 = vsyncpa [#allocation9], 0
    %14 = vsyncpa [#allocation4], 0
    // Predicated region
    $region2: #{tpu_custom_call.1} parent=1 // pred_check
      _
    $region3: #{tpu_custom_call.1} parent=1 // pred_check_branch
      %16 = sbr.rel (0) target = $region5
    $region4: #{tpu_custom_call.1} parent=1 // pred_region
      %s18 = ssub.s32 512, 512
      %19 = vsyncadd [#allocation3], %s18
      %s20 = sshll.u32 [#allocation2], 4
      %s21 = int_to_ptr.vmem [resolvable:$true] %s20
      %26 = dma.hbm_to_vmem [thread:$0]  %s0, 512, %s21, [#allocation3], 128, 128, 8
    $region5: #{tpu_custom_call.1} parent=1 // pred_fallthru
      _
    // Predicated region
    $region6: #{tpu_custom_call.1} parent=1 // pred_check
      _
    $region7: #{tpu_custom_call.1} parent=1 // pred_check_branch
      %28 = sbr.rel (0) target = $region9
    $region8: #{tpu_custom_call.1} parent=1 // pred_region
      %s30 = ssub.s32 2048, 2048
      %31 = vsyncadd [#allocation6], %s30
      %s32 = sshll.u32 [#allocation5], 4
      %s33 = int_to_ptr.vmem [resolvable:$true] %s32
      %38 = dma.hbm_to_vmem [thread:$0]  %s1, 2048, %s33, [#allocation6], 128, 128, 8
    $region9: #{tpu_custom_call.1} parent=1 // pred_fallthru
      _
    // Predicated region
    $region10: #{tpu_custom_call.1} parent=1 // pred_check
      _
    $region11: #{tpu_custom_call.1} parent=1 // pred_check_branch
      %40 = sbr.rel (0) target = $region13
    $region12: #{tpu_custom_call.1} parent=1 // pred_region
      %s42 = ssub.s32 2048, 2048
      %43 = vsyncadd [#allocation6], %s42
      %s44 = sshll.u32 [#allocation7], 4
      %s45 = int_to_ptr.vmem [resolvable:$true] %s44
      %50 = dma.hbm_to_vmem [thread:$0]  %s2, 2048, %s45, [#allocation6], 128, 128, 8
    $region13: #{tpu_custom_call.1} parent=1 // pred_fallthru
      _
    // Predicated region
    $region14: #{tpu_custom_call.1} parent=1 // pred_check
      _
    $region15: #{tpu_custom_call.1} parent=1 // pred_check_branch
      %52 = sbr.rel (0) target = $region17
    $region16: #{tpu_custom_call.1} parent=1 // pred_region
      %s54 = ssub.s32 2048, 2048
      %55 = vsyncadd [#allocation9], %s54
      %s56 = sshll.u32 [#allocation8], 4
      %s57 = int_to_ptr.vmem [resolvable:$true] %s56
      %62 = dma.hbm_to_vmem [thread:$0]  %s3, 2048, %s57, [#allocation9], 128, 128, 8
    $region17: #{tpu_custom_call.1} parent=1 // pred_fallthru
      _
    // Predicated region
    $region18: #{tpu_custom_call.1} parent=1 // pred_check
      _
    $region19: #{tpu_custom_call.1} parent=1 // pred_check_branch
      %64 = sbr.rel (0) target = $region21
    $region20: #{tpu_custom_call.1} parent=1 // pred_region
      %s66 = ssub.s32 2048, 2048
      %67 = vsyncadd [#allocation9], %s66
      %s68 = sshll.u32 [#allocation10], 4
      %s69 = int_to_ptr.vmem [resolvable:$true] %s68
      %74 = dma.hbm_to_vmem [thread:$0]  %s4, 2048, %s69, [#allocation9], 128, 128, 8
    $region21: #{tpu_custom_call.1} parent=1 // pred_fallthru
      _
    // Predicated region
    $region22: #{tpu_custom_call.1} parent=1 // pred_check
      _
    $region23: #{tpu_custom_call.1} parent=1 // pred_check_branch
      %76 = sbr.rel (0) target = $region25
    $region24: #{tpu_custom_call.1} parent=1 // pred_region
      _
    $region25: #{tpu_custom_call.1} parent=1 // pred_fallthru
      _
    // Predicated region
    $region26: #{tpu_custom_call.1} parent=1 // pred_check
      _
    $region27: #{tpu_custom_call.1} parent=1 // pred_check_branch
      %78 = sbr.rel (0) target = $region29
    $region28: #{tpu_custom_call.1} parent=1 // pred_region
      %79 = dma.done [#allocation3], 512
    $region29: #{tpu_custom_call.1} parent=1 // pred_fallthru
      _
    // Predicated region
    $region30: #{tpu_custom_call.1} parent=1 // pred_check
      _
    $region31: #{tpu_custom_call.1} parent=1 // pred_check_branch
      %81 = sbr.rel (0) target = $region33
    $region32: #{tpu_custom_call.1} parent=1 // pred_region
      %82 = dma.done [#allocation6], 2048
    $region33: #{tpu_custom_call.1} parent=1 // pred_fallthru
      _
    // Predicated region
    $region34: #{tpu_custom_call.1} parent=1 // pred_check
      _
    $region35: #{tpu_custom_call.1} parent=1 // pred_check_branch
      %84 = sbr.rel (0) target = $region37
    $region36: #{tpu_custom_call.1} parent=1 // pred_region
      %85 = dma.done [#allocation6], 2048
    $region37: #{tpu_custom_call.1} parent=1 // pred_fallthru
      _
    // Predicated region
    $region38: #{tpu_custom_call.1} parent=1 // pred_check
      _
    $region39: #{tpu_custom_call.1} parent=1 // pred_check_branch
      %87 = sbr.rel (0) target = $region41
    $region40: #{tpu_custom_call.1} parent=1 // pred_region
      %88 = dma.done [#allocation9], 2048
    $region41: #{tpu_custom_call.1} parent=1 // pred_fallthru
      _
    // Predicated region
    $region42: #{tpu_custom_call.1} parent=1 // pred_check
      _
    $region43: #{tpu_custom_call.1} parent=1 // pred_check_branch
      %90 = sbr.rel (0) target = $region45
    $region44: #{tpu_custom_call.1} parent=1 // pred_region
      %91 = dma.done [#allocation9], 2048
    $region45: #{tpu_custom_call.1} parent=1 // pred_fallthru
      _
    %v92 = vld [vmem:[#allocation2] sm:$0xff]
    %v93 = vld [vmem:[#allocation2 + $0x8] sm:$0xff]
    %v94 = vld [vmem:[#allocation2 + $0x10] sm:$0xff]
    %v95 = vld [vmem:[#allocation2 + $0x18] sm:$0xff]
    %v96 = vld [vmem:[#allocation5] sm:$0xff]
    %v97 = vld [vmem:[#allocation5 + $0x8] sm:$0xff]
    %v98 = vld [vmem:[#allocation5 + $0x10] sm:$0xff]
    %v99 = vld [vmem:[#allocation5 + $0x18] sm:$0xff]
    %v100 = vld [vmem:[#allocation5 + $0x20] sm:$0xff]
    %v101 = vld [vmem:[#allocation5 + $0x28] sm:$0xff]
    %v102 = vld [vmem:[#allocation5 + $0x30] sm:$0xff]
    %v103 = vld [vmem:[#allocation5 + $0x38] sm:$0xff]
    %v104 = vld [vmem:[#allocation5 + $0x40] sm:$0xff]
    %v105 = vld [vmem:[#allocation5 + $0x48] sm:$0xff]
    %v106 = vld [vmem:[#allocation5 + $0x50] sm:$0xff]
    %v107 = vld [vmem:[#allocation5 + $0x58] sm:$0xff]
    %v108 = vld [vmem:[#allocation5 + $0x60] sm:$0xff]
    %v109 = vld [vmem:[#allocation5 + $0x68] sm:$0xff]
    %v110 = vld [vmem:[#allocation5 + $0x70] sm:$0xff]
    %v111 = vld [vmem:[#allocation5 + $0x78] sm:$0xff]
    %v112 = vld [vmem:[%s5] sm:$0x1]
    %v113 = vlaneseq
    %v114 = vshrl.u32 %v113, 7
    %v115 = vsub.s32 0, %v114
    %v116 = vrot.slane %v112, %v115
    %117 = vmatprep.subr.mxu0 0.0
    %118 = vmatpush1.msra.mxu0 %v96
    %119 = vmatprep.subr.mxu0 0.0
    %120 = vmatpush1.msra.mxu0 %v97
    %121 = vmatprep.subr.mxu0 0.0
    %122 = vmatpush1.msra.mxu0 %v98
    %123 = vmatprep.subr.mxu0 0.0
    %124 = vmatpush1.msra.mxu0 %v99
    %125 = vmatprep.subr.mxu0 0.0
    %126 = vmatpush1.msra.mxu0 %v100
    %127 = vmatprep.subr.mxu0 0.0
    %128 = vmatpush1.msra.mxu0 %v101
    %129 = vmatprep.subr.mxu0 0.0
    %130 = vmatpush1.msra.mxu0 %v102
    %131 = vmatprep.subr.mxu0 0.0
    %132 = vmatpush1.msra.mxu0 %v103
    %133 = vmatprep.subr.mxu0 0.0
    %134 = vmatpush1.msra.mxu0 %v104
    %135 = vmatprep.subr.mxu0 0.0
    %136 = vmatpush1.msra.mxu0 %v105
    %137 = vmatprep.subr.mxu0 0.0
    %138 = vmatpush1.msra.mxu0 %v106
    %139 = vmatprep.subr.mxu0 0.0
    %140 = vmatpush1.msra.mxu0 %v107
    %141 = vmatprep.subr.mxu0 0.0
    %142 = vmatpush1.msra.mxu0 %v108
    %143 = vmatprep.subr.mxu0 0.0
    %144 = vmatpush1.msra.mxu0 %v109
    %145 = vmatprep.subr.mxu0 0.0
    %146 = vmatpush1.msra.mxu0 %v110
    %147 = vmatprep.subr.mxu0 0.0
    %148 = vmatpush1.msra.mxu0 %v111
    %149 = vmatprep.subr.mxu0 0.0
    %150 = vmatpush1.msra.mxu0 0.0
    %151 = vmatprep.subr.mxu0 0.0
    %152 = vmatpush1.msra.mxu0 0.0
    %153 = vmatprep.subr.mxu0 0.0
    %154 = vmatpush1.msra.mxu0 0.0
    %155 = vmatprep.subr.mxu0 0.0
    %156 = vmatpush1.msra.mxu0 0.0
    %157 = vmatprep.subr.mxu0 0.0
    %158 = vmatpush1.msra.mxu0 0.0
    %159 = vmatprep.subr.mxu0 0.0
    %160 = vmatpush1.msra.mxu0 0.0
    %161 = vmatprep.subr.mxu0 0.0
    %162 = vmatpush1.msra.mxu0 0.0
    %163 = vmatprep.subr.mxu0 0.0
    %164 = vmatpush1.msra.mxu0 0.0
    %165 = vmatprep.subr.mxu0 0.0
    %166 = vmatpush1.msra.mxu0 0.0
    %167 = vmatprep.subr.mxu0 0.0
    %168 = vmatpush1.msra.mxu0 0.0
    %169 = vmatprep.subr.mxu0 0.0
    %170 = vmatpush1.msra.mxu0 0.0
    %171 = vmatprep.subr.mxu0 0.0
    %172 = vmatpush1.msra.mxu0 0.0
    %173 = vmatprep.subr.mxu0 0.0
    %174 = vmatpush1.msra.mxu0 0.0
    %175 = vmatprep.subr.mxu0 0.0
    %176 = vmatpush1.msra.mxu0 0.0
    %177 = vmatprep.subr.mxu0 0.0
    %178 = vmatpush1.msra.mxu0 0.0
    %179 = vmatprep.subr.mxu0 0.0
    %180 = vmatpush1.msra.mxu0 0.0
    %181 = vmatprep.mubr.f32.mxu0 0.0
    %182 = vmatmul.mubr.f32.gmra.mrb[0].mxu0 %v92
    %v183 = vpop.f32.mrb[0].mxu0
    %v184 = vadd.f32 %v116, %v183
    %v185 = vpop.f32.mrb[0].mxu0
    %186 = vmatprep.mubr.f32.mxu0 0.0
    %187 = vmatmul.mubr.f32.gmra.mrb[0].mxu0 %v93
    %v188 = vpop.f32.mrb[0].mxu0
    %v189 = vadd.f32 %v116, %v188
    %v190 = vpop.f32.mrb[0].mxu0
    %191 = vmatprep.mubr.f32.mxu0 0.0
    %192 = vmatmul.mubr.f32.gmra.mrb[0].mxu0 %v94
    %v193 = vpop.f32.mrb[0].mxu0
    %v194 = vadd.f32 %v116, %v193
    %v195 = vpop.f32.mrb[0].mxu0
    %196 = vmatprep.mubr.f32.mxu0 0.0
    %197 = vmatmul.mubr.f32.gmra.mrb[0].mxu0 %v95
    %v198 = vpop.f32.mrb[0].mxu0
    %v199 = vadd.f32 %v116, %v198
    %v200 = vpop.f32.mrb[0].mxu0
    %201 = vdwg.mxu0
    %vm202 = vcmp.ge.f32.partialorder %v184, 0.0
    %vm203 = vcmp.ge.f32.partialorder %v189, 0.0
    %vm204 = vcmp.ge.f32.partialorder %v194, 0.0
    %vm205 = vcmp.ge.f32.partialorder %v199, 0.0
    %v206 = vmul.f32 %v184, 0.0001
    %v207 = vmul.f32 %v189, 0.0001
    %v208 = vmul.f32 %v194, 0.0001
    %v209 = vmul.f32 %v199, 0.0001
    %v210 = vsel %vm202, %v184, %v206
    %v211 = vsel %vm203, %v189, %v207
    %v212 = vsel %vm204, %v194, %v208
    %v213 = vsel %vm205, %v199, %v209
    %v214 = vld [vmem:[#allocation7] sm:$0xff]
    %v215 = vld [vmem:[#allocation7 + $0x8] sm:$0xff]
    %v216 = vld [vmem:[#allocation7 + $0x10] sm:$0xff]
    %v217 = vld [vmem:[#allocation7 + $0x18] sm:$0xff]
    %v218 = vld [vmem:[#allocation7 + $0x20] sm:$0xff]
    %v219 = vld [vmem:[#allocation7 + $0x28] sm:$0xff]
    %v220 = vld [vmem:[#allocation7 + $0x30] sm:$0xff]
    %v221 = vld [vmem:[#allocation7 + $0x38] sm:$0xff]
    %v222 = vld [vmem:[#allocation7 + $0x40] sm:$0xff]
    %v223 = vld [vmem:[#allocation7 + $0x48] sm:$0xff]
    %v224 = vld [vmem:[#allocation7 + $0x50] sm:$0xff]
    %v225 = vld [vmem:[#allocation7 + $0x58] sm:$0xff]
    %v226 = vld [vmem:[#allocation7 + $0x60] sm:$0xff]
    %v227 = vld [vmem:[#allocation7 + $0x68] sm:$0xff]
    %v228 = vld [vmem:[#allocation7 + $0x70] sm:$0xff]
    %v229 = vld [vmem:[#allocation7 + $0x78] sm:$0xff]
    %v230 = vld [vmem:[%s5 + $0x1] sm:$0x1]
    %v231 = vlaneseq
    %v232 = vshrl.u32 %v231, 7
    %v233 = vsub.s32 0, %v232
    %v234 = vrot.slane %v230, %v233
    %235 = vmatprep.subr.mxu0 0.0
    %236 = vmatpush1.msra.mxu0 %v214
    %237 = vmatprep.subr.mxu0 0.0
    %238 = vmatpush1.msra.mxu0 %v215
    %239 = vmatprep.subr.mxu0 0.0
    %240 = vmatpush1.msra.mxu0 %v216
    %241 = vmatprep.subr.mxu0 0.0
    %242 = vmatpush1.msra.mxu0 %v217
    %243 = vmatprep.subr.mxu0 0.0
    %244 = vmatpush1.msra.mxu0 %v218
    %245 = vmatprep.subr.mxu0 0.0
    %246 = vmatpush1.msra.mxu0 %v219
    %247 = vmatprep.subr.mxu0 0.0
    %248 = vmatpush1.msra.mxu0 %v220
    %249 = vmatprep.subr.mxu0 0.0
    %250 = vmatpush1.msra.mxu0 %v221
    %251 = vmatprep.subr.mxu0 0.0
    %252 = vmatpush1.msra.mxu0 %v222
    %253 = vmatprep.subr.mxu0 0.0
    %254 = vmatpush1.msra.mxu0 %v223
    %255 = vmatprep.subr.mxu0 0.0
    %256 = vmatpush1.msra.mxu0 %v224
    %257 = vmatprep.subr.mxu0 0.0
    %258 = vmatpush1.msra.mxu0 %v225
    %259 = vmatprep.subr.mxu0 0.0
    %260 = vmatpush1.msra.mxu0 %v226
    %261 = vmatprep.subr.mxu0 0.0
    %262 = vmatpush1.msra.mxu0 %v227
    %263 = vmatprep.subr.mxu0 0.0
    %264 = vmatpush1.msra.mxu0 %v228
    %265 = vmatprep.subr.mxu0 0.0
    %266 = vmatpush1.msra.mxu0 %v229
    %267 = vmatprep.subr.mxu0 0.0
    %268 = vmatpush1.msra.mxu0 0.0
    %269 = vmatprep.subr.mxu0 0.0
    %270 = vmatpush1.msra.mxu0 0.0
    %271 = vmatprep.subr.mxu0 0.0
    %272 = vmatpush1.msra.mxu0 0.0
    %273 = vmatprep.subr.mxu0 0.0
    %274 = vmatpush1.msra.mxu0 0.0
    %275 = vmatprep.subr.mxu0 0.0
    %276 = vmatpush1.msra.mxu0 0.0
    %277 = vmatprep.subr.mxu0 0.0
    %278 = vmatpush1.msra.mxu0 0.0
    %279 = vmatprep.subr.mxu0 0.0
    %280 = vmatpush1.msra.mxu0 0.0
    %281 = vmatprep.subr.mxu0 0.0
    %282 = vmatpush1.msra.mxu0 0.0
    %283 = vmatprep.subr.mxu0 0.0
    %284 = vmatpush1.msra.mxu0 0.0
    %285 = vmatprep.subr.mxu0 0.0
    %286 = vmatpush1.msra.mxu0 0.0
    %287 = vmatprep.subr.mxu0 0.0
    %288 = vmatpush1.msra.mxu0 0.0
    %289 = vmatprep.subr.mxu0 0.0
    %290 = vmatpush1.msra.mxu0 0.0
    %291 = vmatprep.subr.mxu0 0.0
    %292 = vmatpush1.msra.mxu0 0.0
    %293 = vmatprep.subr.mxu0 0.0
    %294 = vmatpush1.msra.mxu0 0.0
    %295 = vmatprep.subr.mxu0 0.0
    %296 = vmatpush1.msra.mxu0 0.0
    %297 = vmatprep.subr.mxu0 0.0
    %298 = vmatpush1.msra.mxu0 0.0
    %299 = vmatprep.mubr.f32.mxu0 0.0
    %300 = vmatmul.mubr.f32.gmra.mrb[0].mxu0 %v210
    %v301 = vpop.f32.mrb[0].mxu0
    %v302 = vadd.f32 %v234, %v301
    %v303 = vpop.f32.mrb[0].mxu0
    %304 = vmatprep.mubr.f32.mxu0 0.0
    %305 = vmatmul.mubr.f32.gmra.mrb[0].mxu0 %v211
    %v306 = vpop.f32.mrb[0].mxu0
    %v307 = vadd.f32 %v234, %v306
    %v308 = vpop.f32.mrb[0].mxu0
    %309 = vmatprep.mubr.f32.mxu0 0.0
    %310 = vmatmul.mubr.f32.gmra.mrb[0].mxu0 %v212
    %v311 = vpop.f32.mrb[0].mxu0
    %v312 = vadd.f32 %v234, %v311
    %v313 = vpop.f32.mrb[0].mxu0
    %314 = vmatprep.mubr.f32.mxu0 0.0
    %315 = vmatmul.mubr.f32.gmra.mrb[0].mxu0 %v213
    %v316 = vpop.f32.mrb[0].mxu0
    %v317 = vadd.f32 %v234, %v316
    %v318 = vpop.f32.mrb[0].mxu0
    %319 = vdwg.mxu0
    %vm320 = vcmp.ge.f32.partialorder %v302, 0.0
    %vm321 = vcmp.ge.f32.partialorder %v307, 0.0
    %vm322 = vcmp.ge.f32.partialorder %v312, 0.0
    %vm323 = vcmp.ge.f32.partialorder %v317, 0.0
    %v324 = vmul.f32 %v302, 0.0001
    %v325 = vmul.f32 %v307, 0.0001
    %v326 = vmul.f32 %v312, 0.0001
    %v327 = vmul.f32 %v317, 0.0001
    %v328 = vsel %vm320, %v302, %v324
    %v329 = vsel %vm321, %v307, %v325
    %v330 = vsel %vm322, %v312, %v326
    %v331 = vsel %vm323, %v317, %v327
    %v332 = vld [vmem:[#allocation8] sm:$0xff]
    %v333 = vld [vmem:[#allocation8 + $0x8] sm:$0xff]
    %v334 = vld [vmem:[#allocation8 + $0x10] sm:$0xff]
    %v335 = vld [vmem:[#allocation8 + $0x18] sm:$0xff]
    %v336 = vld [vmem:[#allocation8 + $0x20] sm:$0xff]
    %v337 = vld [vmem:[#allocation8 + $0x28] sm:$0xff]
    %v338 = vld [vmem:[#allocation8 + $0x30] sm:$0xff]
    %v339 = vld [vmem:[#allocation8 + $0x38] sm:$0xff]
    %v340 = vld [vmem:[#allocation8 + $0x40] sm:$0xff]
    %v341 = vld [vmem:[#allocation8 + $0x48] sm:$0xff]
    %v342 = vld [vmem:[#allocation8 + $0x50] sm:$0xff]
    %v343 = vld [vmem:[#allocation8 + $0x58] sm:$0xff]
    %v344 = vld [vmem:[#allocation8 + $0x60] sm:$0xff]
    %v345 = vld [vmem:[#allocation8 + $0x68] sm:$0xff]
    %v346 = vld [vmem:[#allocation8 + $0x70] sm:$0xff]
    %v347 = vld [vmem:[#allocation8 + $0x78] sm:$0xff]
    %v348 = vld [vmem:[%s5 + $0x2] sm:$0x1]
    %v349 = vlaneseq
    %v350 = vshrl.u32 %v349, 7
    %v351 = vsub.s32 0, %v350
    %v352 = vrot.slane %v348, %v351
    %353 = vmatprep.subr.mxu0 0.0
    %354 = vmatpush1.msra.mxu0 %v332
    %355 = vmatprep.subr.mxu0 0.0
    %356 = vmatpush1.msra.mxu0 %v333
    %357 = vmatprep.subr.mxu0 0.0
    %358 = vmatpush1.msra.mxu0 %v334
    %359 = vmatprep.subr.mxu0 0.0
    %360 = vmatpush1.msra.mxu0 %v335
    %361 = vmatprep.subr.mxu0 0.0
    %362 = vmatpush1.msra.mxu0 %v336
    %363 = vmatprep.subr.mxu0 0.0
    %364 = vmatpush1.msra.mxu0 %v337
    %365 = vmatprep.subr.mxu0 0.0
    %366 = vmatpush1.msra.mxu0 %v338
    %367 = vmatprep.subr.mxu0 0.0
    %368 = vmatpush1.msra.mxu0 %v339
    %369 = vmatprep.subr.mxu0 0.0
    %370 = vmatpush1.msra.mxu0 %v340
    %371 = vmatprep.subr.mxu0 0.0
    %372 = vmatpush1.msra.mxu0 %v341
    %373 = vmatprep.subr.mxu0 0.0
    %374 = vmatpush1.msra.mxu0 %v342
    %375 = vmatprep.subr.mxu0 0.0
    %376 = vmatpush1.msra.mxu0 %v343
    %377 = vmatprep.subr.mxu0 0.0
    %378 = vmatpush1.msra.mxu0 %v344
    %379 = vmatprep.subr.mxu0 0.0
    %380 = vmatpush1.msra.mxu0 %v345
    %381 = vmatprep.subr.mxu0 0.0
    %382 = vmatpush1.msra.mxu0 %v346
    %383 = vmatprep.subr.mxu0 0.0
    %384 = vmatpush1.msra.mxu0 %v347
    %385 = vmatprep.subr.mxu0 0.0
    %386 = vmatpush1.msra.mxu0 0.0
    %387 = vmatprep.subr.mxu0 0.0
    %388 = vmatpush1.msra.mxu0 0.0
    %389 = vmatprep.subr.mxu0 0.0
    %390 = vmatpush1.msra.mxu0 0.0
    %391 = vmatprep.subr.mxu0 0.0
    %392 = vmatpush1.msra.mxu0 0.0
    %393 = vmatprep.subr.mxu0 0.0
    %394 = vmatpush1.msra.mxu0 0.0
    %395 = vmatprep.subr.mxu0 0.0
    %396 = vmatpush1.msra.mxu0 0.0
    %397 = vmatprep.subr.mxu0 0.0
    %398 = vmatpush1.msra.mxu0 0.0
    %399 = vmatprep.subr.mxu0 0.0
    %400 = vmatpush1.msra.mxu0 0.0
    %401 = vmatprep.subr.mxu0 0.0
    %402 = vmatpush1.msra.mxu0 0.0
    %403 = vmatprep.subr.mxu0 0.0
    %404 = vmatpush1.msra.mxu0 0.0
    %405 = vmatprep.subr.mxu0 0.0
    %406 = vmatpush1.msra.mxu0 0.0
    %407 = vmatprep.subr.mxu0 0.0
    %408 = vmatpush1.msra.mxu0 0.0
    %409 = vmatprep.subr.mxu0 0.0
    %410 = vmatpush1.msra.mxu0 0.0
    %411 = vmatprep.subr.mxu0 0.0
    %412 = vmatpush1.msra.mxu0 0.0
    %413 = vmatprep.subr.mxu0 0.0
    %414 = vmatpush1.msra.mxu0 0.0
    %415 = vmatprep.subr.mxu0 0.0
    %416 = vmatpush1.msra.mxu0 0.0
    %417 = vmatprep.mubr.f32.mxu0 0.0
    %418 = vmatmul.mubr.f32.gmra.mrb[0].mxu0 %v328
    %v419 = vpop.f32.mrb[0].mxu0
    %v420 = vadd.f32 %v352, %v419
    %v421 = vpop.f32.mrb[0].mxu0
    %422 = vmatprep.mubr.f32.mxu0 0.0
    %423 = vmatmul.mubr.f32.gmra.mrb[0].mxu0 %v329
    %v424 = vpop.f32.mrb[0].mxu0
    %v425 = vadd.f32 %v352, %v424
    %v426 = vpop.f32.mrb[0].mxu0
    %427 = vmatprep.mubr.f32.mxu0 0.0
    %428 = vmatmul.mubr.f32.gmra.mrb[0].mxu0 %v330
    %v429 = vpop.f32.mrb[0].mxu0
    %v430 = vadd.f32 %v352, %v429
    %v431 = vpop.f32.mrb[0].mxu0
    %432 = vmatprep.mubr.f32.mxu0 0.0
    %433 = vmatmul.mubr.f32.gmra.mrb[0].mxu0 %v331
    %v434 = vpop.f32.mrb[0].mxu0
    %v435 = vadd.f32 %v352, %v434
    %v436 = vpop.f32.mrb[0].mxu0
    %437 = vdwg.mxu0
    %vm438 = vcmp.ge.f32.partialorder %v420, 0.0
    %vm439 = vcmp.ge.f32.partialorder %v425, 0.0
    %vm440 = vcmp.ge.f32.partialorder %v430, 0.0
    %vm441 = vcmp.ge.f32.partialorder %v435, 0.0
    %v442 = vmul.f32 %v420, 0.0001
    %v443 = vmul.f32 %v425, 0.0001
    %v444 = vmul.f32 %v430, 0.0001
    %v445 = vmul.f32 %v435, 0.0001
    %v446 = vsel %vm438, %v420, %v442
    %v447 = vsel %vm439, %v425, %v443
    %v448 = vsel %vm440, %v430, %v444
    %v449 = vsel %vm441, %v435, %v445
    %v450 = vld [vmem:[#allocation10] sm:$0xff]
    %v451 = vld [vmem:[#allocation10 + $0x8] sm:$0xff]
    %v452 = vld [vmem:[#allocation10 + $0x10] sm:$0xff]
    %v453 = vld [vmem:[#allocation10 + $0x18] sm:$0xff]
    %v454 = vld [vmem:[#allocation10 + $0x20] sm:$0xff]
    %v455 = vld [vmem:[#allocation10 + $0x28] sm:$0xff]
    %v456 = vld [vmem:[#allocation10 + $0x30] sm:$0xff]
    %v457 = vld [vmem:[#allocation10 + $0x38] sm:$0xff]
    %v458 = vld [vmem:[#allocation10 + $0x40] sm:$0xff]
    %v459 = vld [vmem:[#allocation10 + $0x48] sm:$0xff]
    %v460 = vld [vmem:[#allocation10 + $0x50] sm:$0xff]
    %v461 = vld [vmem:[#allocation10 + $0x58] sm:$0xff]
    %v462 = vld [vmem:[#allocation10 + $0x60] sm:$0xff]
    %v463 = vld [vmem:[#allocation10 + $0x68] sm:$0xff]
    %v464 = vld [vmem:[#allocation10 + $0x70] sm:$0xff]
    %v465 = vld [vmem:[#allocation10 + $0x78] sm:$0xff]
    %v466 = vld [vmem:[%s5 + $0x3] sm:$0x1]
    %v467 = vlaneseq
    %v468 = vshrl.u32 %v467, 7
    %v469 = vsub.s32 0, %v468
    %v470 = vrot.slane %v466, %v469
    %471 = vmatprep.subr.mxu0 0.0
    %472 = vmatpush1.msra.mxu0 %v450
    %473 = vmatprep.subr.mxu0 0.0
    %474 = vmatpush1.msra.mxu0 %v451
    %475 = vmatprep.subr.mxu0 0.0
    %476 = vmatpush1.msra.mxu0 %v452
    %477 = vmatprep.subr.mxu0 0.0
    %478 = vmatpush1.msra.mxu0 %v453
    %479 = vmatprep.subr.mxu0 0.0
    %480 = vmatpush1.msra.mxu0 %v454
    %481 = vmatprep.subr.mxu0 0.0
    %482 = vmatpush1.msra.mxu0 %v455
    %483 = vmatprep.subr.mxu0 0.0
    %484 = vmatpush1.msra.mxu0 %v456
    %485 = vmatprep.subr.mxu0 0.0
    %486 = vmatpush1.msra.mxu0 %v457
    %487 = vmatprep.subr.mxu0 0.0
    %488 = vmatpush1.msra.mxu0 %v458
    %489 = vmatprep.subr.mxu0 0.0
    %490 = vmatpush1.msra.mxu0 %v459
    %491 = vmatprep.subr.mxu0 0.0
    %492 = vmatpush1.msra.mxu0 %v460
    %493 = vmatprep.subr.mxu0 0.0
    %494 = vmatpush1.msra.mxu0 %v461
    %495 = vmatprep.subr.mxu0 0.0
    %496 = vmatpush1.msra.mxu0 %v462
    %497 = vmatprep.subr.mxu0 0.0
    %498 = vmatpush1.msra.mxu0 %v463
    %499 = vmatprep.subr.mxu0 0.0
    %500 = vmatpush1.msra.mxu0 %v464
    %501 = vmatprep.subr.mxu0 0.0
    %502 = vmatpush1.msra.mxu0 %v465
    %503 = vmatprep.subr.mxu0 0.0
    %504 = vmatpush1.msra.mxu0 0.0
    %505 = vmatprep.subr.mxu0 0.0
    %506 = vmatpush1.msra.mxu0 0.0
    %507 = vmatprep.subr.mxu0 0.0
    %508 = vmatpush1.msra.mxu0 0.0
    %509 = vmatprep.subr.mxu0 0.0
    %510 = vmatpush1.msra.mxu0 0.0
    %511 = vmatprep.subr.mxu0 0.0
    %512 = vmatpush1.msra.mxu0 0.0
    %513 = vmatprep.subr.mxu0 0.0
    %514 = vmatpush1.msra.mxu0 0.0
    %515 = vmatprep.subr.mxu0 0.0
    %516 = vmatpush1.msra.mxu0 0.0
    %517 = vmatprep.subr.mxu0 0.0
    %518 = vmatpush1.msra.mxu0 0.0
    %519 = vmatprep.subr.mxu0 0.0
    %520 = vmatpush1.msra.mxu0 0.0
    %521 = vmatprep.subr.mxu0 0.0
    %522 = vmatpush1.msra.mxu0 0.0
    %523 = vmatprep.subr.mxu0 0.0
    %524 = vmatpush1.msra.mxu0 0.0
    %525 = vmatprep.subr.mxu0 0.0
    %526 = vmatpush1.msra.mxu0 0.0
    %527 = vmatprep.subr.mxu0 0.0
    %528 = vmatpush1.msra.mxu0 0.0
    %529 = vmatprep.subr.mxu0 0.0
    %530 = vmatpush1.msra.mxu0 0.0
    %531 = vmatprep.subr.mxu0 0.0
    %532 = vmatpush1.msra.mxu0 0.0
    %533 = vmatprep.subr.mxu0 0.0
    %534 = vmatpush1.msra.mxu0 0.0
    %535 = vmatprep.mubr.f32.mxu0 0.0
    %536 = vmatmul.mubr.f32.gmra.mrb[0].mxu0 %v446
    %v537 = vpop.f32.mrb[0].mxu0
    %v538 = vadd.f32 %v470, %v537
    %v539 = vpop.f32.mrb[0].mxu0
    %540 = vmatprep.mubr.f32.mxu0 0.0
    %541 = vmatmul.mubr.f32.gmra.mrb[0].mxu0 %v447
    %v542 = vpop.f32.mrb[0].mxu0
    %v543 = vadd.f32 %v470, %v542
    %v544 = vpop.f32.mrb[0].mxu0
    %545 = vmatprep.mubr.f32.mxu0 0.0
    %546 = vmatmul.mubr.f32.gmra.mrb[0].mxu0 %v448
    %v547 = vpop.f32.mrb[0].mxu0
    %v548 = vadd.f32 %v470, %v547
    %v549 = vpop.f32.mrb[0].mxu0
    %550 = vmatprep.mubr.f32.mxu0 0.0
    %551 = vmatmul.mubr.f32.gmra.mrb[0].mxu0 %v449
    %v552 = vpop.f32.mrb[0].mxu0
    %v553 = vadd.f32 %v470, %v552
    %v554 = vpop.f32.mrb[0].mxu0
    %555 = vdwg.mxu0
    %556 = vst [vmem:[#allocation11] sm:$0xff] %v538
    %557 = vst [vmem:[#allocation11 + $0x8] sm:$0xff] %v543
    %558 = vst [vmem:[#allocation11 + $0x10] sm:$0xff] %v548
    %559 = vst [vmem:[#allocation11 + $0x18] sm:$0xff] %v553
    // Predicated region
    $region46: #{tpu_custom_call.1} parent=1 // pred_check
      _
    $region47: #{tpu_custom_call.1} parent=1 // pred_check_branch
      %561 = sbr.rel (0) target = $region49
    $region48: #{tpu_custom_call.1} parent=1 // pred_region
      %s563 = ssub.s32 512, 512
      %564 = vsyncadd [#allocation4], %s563
      %s565 = sshll.u32 [#allocation11], 4
      %s566 = int_to_ptr.vmem [resolvable:$true] %s565
      %571 = dma.vmem_to_hbm [thread:$0]  %s566, 512, %s6, [#allocation4], 128, 128, 8
    $region49: #{tpu_custom_call.1} parent=1 // pred_fallthru
      _
    // Predicated region
    $region50: #{tpu_custom_call.1} parent=1 // pred_check
      _
    $region51: #{tpu_custom_call.1} parent=1 // pred_check_branch
      %573 = sbr.rel (0) target = $region53
    $region52: #{tpu_custom_call.1} parent=1 // pred_region
      %574 = dma.done [#allocation4], 512
    $region53: #{tpu_custom_call.1} parent=1 // pred_fallthru
      _
    %575 = vsyncpa [#allocation3], 1
    %576 = vsyncpa [#allocation6], 1
    %577 = vsyncpa [#allocation9], 1
    %578 = vsyncpa [#allocation4], 1

// kernel: tpu_custom_call.1
$region0: #{tpu_custom_call.1}
  #allocation0 [shape = 'u32[]', space=smem, size = 0x4, offset = 0x4, fixed_abs, tag = 'smem constant byte address 0x4 - core index']
  #allocation1 [shape = 'u32[144,128]{1,0:T(1,128)}', space=vmem, size = 0x12000, scoped, tag = 'internal scratch']
  %s0 = inlined_call_operand.hbm [shape: f32[32,128], index: 0, kind: input, shape index: {}]
  %s1 = inlined_call_operand.hbm [shape: f32[128,128], index: 1, kind: input, shape index: {}]
  %s2 = inlined_call_operand.hbm [shape: f32[128,128], index: 2, kind: input, shape index: {}]
  %s3 = inlined_call_operand.hbm [shape: f32[128,128], index: 3, kind: input, shape index: {}]
  %s4 = inlined_call_operand.hbm [shape: f32[128,128], index: 4, kind: input, shape index: {}]
  %s5 = inlined_call_operand.vmem [shape: f32[4,128], index: 5, kind: input, shape index: {}]
  %s6 = inlined_call_operand.hbm [shape: f32[32,128], index: 6, kind: output, shape index: {}]
  %s7 = sld [smem:[#allocation0]]
  $region54: #{tpu_custom_call.1} parent=0
    _
  %s9 = ssub.s32 1, %s7
  %s10 = scalar_select 0, %s9, %s7
  $region1: #{tpu_custom_call.1} parent=0
    #allocation2 [shape = 'u8[16384]{0}', space=vmem, size = 0x4000, scoped, tag = 'input window, operand 0, single buffered']
    #allocation3 [shape = 's32[1]{0}', space=sflag, size = 0x4, scoped, tag = 'scoped memory for tpu_custom_call.1']
    #allocation4 [shape = 's32[1]{0}', space=sflag, size = 0x4, scoped, tag = 'scoped memory for tpu_custom_call.1']
    #allocation5 [shape = 'u8[65536]{0}', space=vmem, size = 0x10000, scoped, tag = 'input window, operand 1, single buffered']
    #allocation6 [shape = 's32[1]{0}', space=sflag, size = 0x4, scoped, tag = 'scoped memory for tpu_custom_call.1']
    #allocation7 [shape = 'u8[65536]{0}', space=vmem, size = 0x10000, scoped, tag = 'input window, operand 2, single buffered']
    #allocation8 [shape = 'u8[65536]{0}', space=vmem, size = 0x10000, scoped, tag = 'input window, operand 3, single buffered']
    #allocation9 [shape = 's32[1]{0}', space=sflag, size = 0x4, scoped, tag = 'scoped memory for tpu_custom_call.1']
    #allocation10 [shape = 'u8[65536]{0}', space=vmem, size = 0x10000, scoped, tag = 'input window, operand 4, single buffered']
    #allocation11 [shape = 'u8[16384]{0}', space=vmem, size = 0x4000, scoped, tag = 'output window, operand 0, single buffered']
    %11 = vsyncpa [#allocation3], 0
    %12 = vsyncpa [#allocation6], 0
    %13 = vsyncpa [#allocation9], 0
    %14 = vsyncpa [#allocation4], 0
    // Predicated region
    $region2: #{tpu_custom_call.1} parent=1 // pred_check
      _
    $region3: #{tpu_custom_call.1} parent=1 // pred_check_branch
      %16 = sbr.rel (0) target = $region5
    $region4: #{tpu_custom_call.1} parent=1 // pred_region
      %s18 = ssub.s32 512, 512
      %19 = vsyncadd [#allocation3], %s18
      %s20 = sshll.u32 [#allocation2], 4
      %s21 = int_to_ptr.vmem [resolvable:$true] %s20
      %26 = dma.hbm_to_vmem [thread:$0]  %s0, 512, %s21, [#allocation3], 128, 128, 8
    $region5: #{tpu_custom_call.1} parent=1 // pred_fallthru
      _
    // Predicated region
    $region6: #{tpu_custom_call.1} parent=1 // pred_check
      _
    $region7: #{tpu_custom_call.1} parent=1 // pred_check_branch
      %28 = sbr.rel (0) target = $region9
    $region8: #{tpu_custom_call.1} parent=1 // pred_region
      %s30 = ssub.s32 2048, 2048
      %31 = vsyncadd [#allocation6], %s30
      %s32 = sshll.u32 [#allocation5], 4
      %s33 = int_to_ptr.vmem [resolvable:$true] %s32
      %38 = dma.hbm_to_vmem [thread:$0]  %s1, 2048, %s33, [#allocation6], 128, 128, 8
    $region9: #{tpu_custom_call.1} parent=1 // pred_fallthru
      _
    // Predicated region
    $region10: #{tpu_custom_call.1} parent=1 // pred_check
      _
    $region11: #{tpu_custom_call.1} parent=1 // pred_check_branch
      %40 = sbr.rel (0) target = $region13
    $region12: #{tpu_custom_call.1} parent=1 // pred_region
      %s42 = ssub.s32 2048, 2048
      %43 = vsyncadd [#allocation6], %s42
      %s44 = sshll.u32 [#allocation7], 4
      %s45 = int_to_ptr.vmem [resolvable:$true] %s44
      %50 = dma.hbm_to_vmem [thread:$0]  %s2, 2048, %s45, [#allocation6], 128, 128, 8
    $region13: #{tpu_custom_call.1} parent=1 // pred_fallthru
      _
    // Predicated region
    $region14: #{tpu_custom_call.1} parent=1 // pred_check
      _
    $region15: #{tpu_custom_call.1} parent=1 // pred_check_branch
      %52 = sbr.rel (0) target = $region17
    $region16: #{tpu_custom_call.1} parent=1 // pred_region
      %s54 = ssub.s32 2048, 2048
      %55 = vsyncadd [#allocation9], %s54
      %s56 = sshll.u32 [#allocation8], 4
      %s57 = int_to_ptr.vmem [resolvable:$true] %s56
      %62 = dma.hbm_to_vmem [thread:$0]  %s3, 2048, %s57, [#allocation9], 128, 128, 8
    $region17: #{tpu_custom_call.1} parent=1 // pred_fallthru
      _
    // Predicated region
    $region18: #{tpu_custom_call.1} parent=1 // pred_check
      _
    $region19: #{tpu_custom_call.1} parent=1 // pred_check_branch
      %64 = sbr.rel (0) target = $region21
    $region20: #{tpu_custom_call.1} parent=1 // pred_region
      %s66 = ssub.s32 2048, 2048
      %67 = vsyncadd [#allocation9], %s66
      %s68 = sshll.u32 [#allocation10], 4
      %s69 = int_to_ptr.vmem [resolvable:$true] %s68
      %74 = dma.hbm_to_vmem [thread:$0]  %s4, 2048, %s69, [#allocation9], 128, 128, 8
    $region21: #{tpu_custom_call.1} parent=1 // pred_fallthru
      _
    // Predicated region
    $region22: #{tpu_custom_call.1} parent=1 // pred_check
      _
    $region23: #{tpu_custom_call.1} parent=1 // pred_check_branch
      %76 = sbr.rel (0) target = $region25
    $region24: #{tpu_custom_call.1} parent=1 // pred_region
      _
    $region25: #{tpu_custom_call.1} parent=1 // pred_fallthru
      _
    // Predicated region
    $region26: #{tpu_custom_call.1} parent=1 // pred_check
      _
    $region27: #{tpu_custom_call.1} parent=1 // pred_check_branch
      %78 = sbr.rel (0) target = $region29
    $region28: #{tpu_custom_call.1} parent=1 // pred_region
      %79 = dma.done [#allocation3], 512
    $region29: #{tpu_custom_call.1} parent=1 // pred_fallthru
      _
    // Predicated region
    $region30: #{tpu_custom_call.1} parent=1 // pred_check
      _
    $region31: #{tpu_custom_call.1} parent=1 // pred_check_branch
      %81 = sbr.rel (0) target = $region33
    $region32: #{tpu_custom_call.1} parent=1 // pred_region
      %82 = dma.done [#allocation6], 2048
    $region33: #{tpu_custom_call.1} parent=1 // pred_fallthru
      _
    // Predicated region
    $region34: #{tpu_custom_call.1} parent=1 // pred_check
      _
    $region35: #{tpu_custom_call.1} parent=1 // pred_check_branch
      %84 = sbr.rel (0) target = $region37
    $region36: #{tpu_custom_call.1} parent=1 // pred_region
      %85 = dma.done [#allocation6], 2048
    $region37: #{tpu_custom_call.1} parent=1 // pred_fallthru
      _
    // Predicated region
    $region38: #{tpu_custom_call.1} parent=1 // pred_check
      _
    $region39: #{tpu_custom_call.1} parent=1 // pred_check_branch
      %87 = sbr.rel (0) target = $region41
    $region40: #{tpu_custom_call.1} parent=1 // pred_region
      %88 = dma.done [#allocation9], 2048
    $region41: #{tpu_custom_call.1} parent=1 // pred_fallthru
      _
    // Predicated region
    $region42: #{tpu_custom_call.1} parent=1 // pred_check
      _
    $region43: #{tpu_custom_call.1} parent=1 // pred_check_branch
      %90 = sbr.rel (0) target = $region45
    $region44: #{tpu_custom_call.1} parent=1 // pred_region
      %91 = dma.done [#allocation9], 2048
    $region45: #{tpu_custom_call.1} parent=1 // pred_fallthru
      _
    %v92 = vld [vmem:[#allocation2] sm:$0xff]
    %v93 = vld [vmem:[#allocation2 + $0x8] sm:$0xff]
    %v94 = vld [vmem:[#allocation2 + $0x10] sm:$0xff]
    %v95 = vld [vmem:[#allocation2 + $0x18] sm:$0xff]
    %v96 = vld [vmem:[#allocation5] sm:$0xff]
    %v97 = vld [vmem:[#allocation5 + $0x8] sm:$0xff]
    %v98 = vld [vmem:[#allocation5 + $0x10] sm:$0xff]
    %v99 = vld [vmem:[#allocation5 + $0x18] sm:$0xff]
    %v100 = vld [vmem:[#allocation5 + $0x20] sm:$0xff]
    %v101 = vld [vmem:[#allocation5 + $0x28] sm:$0xff]
    %v102 = vld [vmem:[#allocation5 + $0x30] sm:$0xff]
    %v103 = vld [vmem:[#allocation5 + $0x38] sm:$0xff]
    %v104 = vld [vmem:[#allocation5 + $0x40] sm:$0xff]
    %v105 = vld [vmem:[#allocation5 + $0x48] sm:$0xff]
    %v106 = vld [vmem:[#allocation5 + $0x50] sm:$0xff]
    %v107 = vld [vmem:[#allocation5 + $0x58] sm:$0xff]
    %v108 = vld [vmem:[#allocation5 + $0x60] sm:$0xff]
    %v109 = vld [vmem:[#allocation5 + $0x68] sm:$0xff]
    %v110 = vld [vmem:[#allocation5 + $0x70] sm:$0xff]
    %v111 = vld [vmem:[#allocation5 + $0x78] sm:$0xff]
    %v112 = vld [vmem:[%s5] sm:$0x1]
    %v113 = vlaneseq
    %v114 = vshrl.u32 %v113, 7
    %v115 = vsub.s32 0, %v114
    %v116 = vrot.slane %v112, %v115
    %117 = vmatprep.subr.mxu0 0.0
    %118 = vmatpush1.msra.mxu0 %v96
    %119 = vmatprep.subr.mxu0 0.0
    %120 = vmatpush1.msra.mxu0 %v97
    %121 = vmatprep.subr.mxu0 0.0
    %122 = vmatpush1.msra.mxu0 %v98
    %123 = vmatprep.subr.mxu0 0.0
    %124 = vmatpush1.msra.mxu0 %v99
    %125 = vmatprep.subr.mxu0 0.0
    %126 = vmatpush1.msra.mxu0 %v100
    %127 = vmatprep.subr.mxu0 0.0
    %128 = vmatpush1.msra.mxu0 %v101
    %129 = vmatprep.subr.mxu0 0.0
    %130 = vmatpush1.msra.mxu0 %v102
    %131 = vmatprep.subr.mxu0 0.0
    %132 = vmatpush1.msra.mxu0 %v103
    %133 = vmatprep.subr.mxu0 0.0
    %134 = vmatpush1.msra.mxu0 %v104
    %135 = vmatprep.subr.mxu0 0.0
    %136 = vmatpush1.msra.mxu0 %v105
    %137 = vmatprep.subr.mxu0 0.0
    %138 = vmatpush1.msra.mxu0 %v106
    %139 = vmatprep.subr.mxu0 0.0
    %140 = vmatpush1.msra.mxu0 %v107
    %141 = vmatprep.subr.mxu0 0.0
    %142 = vmatpush1.msra.mxu0 %v108
    %143 = vmatprep.subr.mxu0 0.0
    %144 = vmatpush1.msra.mxu0 %v109
    %145 = vmatprep.subr.mxu0 0.0
    %146 = vmatpush1.msra.mxu0 %v110
    %147 = vmatprep.subr.mxu0 0.0
    %148 = vmatpush1.msra.mxu0 %v111
    %149 = vmatprep.subr.mxu0 0.0
    %150 = vmatpush1.msra.mxu0 0.0
    %151 = vmatprep.subr.mxu0 0.0
    %152 = vmatpush1.msra.mxu0 0.0
    %153 = vmatprep.subr.mxu0 0.0
    %154 = vmatpush1.msra.mxu0 0.0
    %155 = vmatprep.subr.mxu0 0.0
    %156 = vmatpush1.msra.mxu0 0.0
    %157 = vmatprep.subr.mxu0 0.0
    %158 = vmatpush1.msra.mxu0 0.0
    %159 = vmatprep.subr.mxu0 0.0
    %160 = vmatpush1.msra.mxu0 0.0
    %161 = vmatprep.subr.mxu0 0.0
    %162 = vmatpush1.msra.mxu0 0.0
    %163 = vmatprep.subr.mxu0 0.0
    %164 = vmatpush1.msra.mxu0 0.0
    %165 = vmatprep.subr.mxu0 0.0
    %166 = vmatpush1.msra.mxu0 0.0
    %167 = vmatprep.subr.mxu0 0.0
    %168 = vmatpush1.msra.mxu0 0.0
    %169 = vmatprep.subr.mxu0 0.0
    %170 = vmatpush1.msra.mxu0 0.0
    %171 = vmatprep.subr.mxu0 0.0
    %172 = vmatpush1.msra.mxu0 0.0
    %173 = vmatprep.subr.mxu0 0.0
    %174 = vmatpush1.msra.mxu0 0.0
    %175 = vmatprep.subr.mxu0 0.0
    %176 = vmatpush1.msra.mxu0 0.0
    %177 = vmatprep.subr.mxu0 0.0
    %178 = vmatpush1.msra.mxu0 0.0
    %179 = vmatprep.subr.mxu0 0.0
    %180 = vmatpush1.msra.mxu0 0.0
    %181 = vmatprep.mubr.f32.mxu0 0.0
    %182 = vmatmul.mubr.f32.gmra.mrb[0].mxu0 %v92
    %v183 = vpop.f32.mrb[0].mxu0
    %v184 = vadd.f32 %v116, %v183
    %v185 = vpop.f32.mrb[0].mxu0
    %186 = vmatprep.mubr.f32.mxu0 0.0
    %187 = vmatmul.mubr.f32.gmra.mrb[0].mxu0 %v93
    %v188 = vpop.f32.mrb[0].mxu0
    %v189 = vadd.f32 %v116, %v188
    %v190 = vpop.f32.mrb[0].mxu0
    %191 = vmatprep.mubr.f32.mxu0 0.0
    %192 = vmatmul.mubr.f32.gmra.mrb[0].mxu0 %v94
    %v193 = vpop.f32.mrb[0].mxu0
    %v194 = vadd.f32 %v116, %v193
    %v195 = vpop.f32.mrb[0].mxu0
    %196 = vmatprep.mubr.f32.mxu0 0.0
    %197 = vmatmul.mubr.f32.gmra.mrb[0].mxu0 %v95
    %v198 = vpop.f32.mrb[0].mxu0
    %v199 = vadd.f32 %v116, %v198
    %v200 = vpop.f32.mrb[0].mxu0
    %201 = vdwg.mxu0
    %vm202 = vcmp.ge.f32.partialorder %v184, 0.0
    %vm203 = vcmp.ge.f32.partialorder %v189, 0.0
    %vm204 = vcmp.ge.f32.partialorder %v194, 0.0
    %vm205 = vcmp.ge.f32.partialorder %v199, 0.0
    %v206 = vmul.f32 %v184, 0.0001
    %v207 = vmul.f32 %v189, 0.0001
    %v208 = vmul.f32 %v194, 0.0001
    %v209 = vmul.f32 %v199, 0.0001
    %v210 = vsel %vm202, %v184, %v206
    %v211 = vsel %vm203, %v189, %v207
    %v212 = vsel %vm204, %v194, %v208
    %v213 = vsel %vm205, %v199, %v209
    %v214 = vld [vmem:[#allocation7] sm:$0xff]
    %v215 = vld [vmem:[#allocation7 + $0x8] sm:$0xff]
    %v216 = vld [vmem:[#allocation7 + $0x10] sm:$0xff]
    %v217 = vld [vmem:[#allocation7 + $0x18] sm:$0xff]
    %v218 = vld [vmem:[#allocation7 + $0x20] sm:$0xff]
    %v219 = vld [vmem:[#allocation7 + $0x28] sm:$0xff]
    %v220 = vld [vmem:[#allocation7 + $0x30] sm:$0xff]
    %v221 = vld [vmem:[#allocation7 + $0x38] sm:$0xff]
    %v222 = vld [vmem:[#allocation7 + $0x40] sm:$0xff]
    %v223 = vld [vmem:[#allocation7 + $0x48] sm:$0xff]
    %v224 = vld [vmem:[#allocation7 + $0x50] sm:$0xff]
    %v225 = vld [vmem:[#allocation7 + $0x58] sm:$0xff]
    %v226 = vld [vmem:[#allocation7 + $0x60] sm:$0xff]
    %v227 = vld [vmem:[#allocation7 + $0x68] sm:$0xff]
    %v228 = vld [vmem:[#allocation7 + $0x70] sm:$0xff]
    %v229 = vld [vmem:[#allocation7 + $0x78] sm:$0xff]
    %v230 = vld [vmem:[%s5 + $0x1] sm:$0x1]
    %v231 = vlaneseq
    %v232 = vshrl.u32 %v231, 7
    %v233 = vsub.s32 0, %v232
    %v234 = vrot.slane %v230, %v233
    %235 = vmatprep.subr.mxu0 0.0
    %236 = vmatpush1.msra.mxu0 %v214
    %237 = vmatprep.subr.mxu0 0.0
    %238 = vmatpush1.msra.mxu0 %v215
    %239 = vmatprep.subr.mxu0 0.0
    %240 = vmatpush1.msra.mxu0 %v216
    %241 = vmatprep.subr.mxu0 0.0
    %242 = vmatpush1.msra.mxu0 %v217
    %243 = vmatprep.subr.mxu0 0.0
    %244 = vmatpush1.msra.mxu0 %v218
    %245 = vmatprep.subr.mxu0 0.0
    %246 = vmatpush1.msra.mxu0 %v219
    %247 = vmatprep.subr.mxu0 0.0
    %248 = vmatpush1.msra.mxu0 %v220
    %249 = vmatprep.subr.mxu0 0.0
    %250 = vmatpush1.msra.mxu0 %v221
    %251 = vmatprep.subr.mxu0 0.0
    %252 = vmatpush1.msra.mxu0 %v222
    %253 = vmatprep.subr.mxu0 0.0
    %254 = vmatpush1.msra.mxu0 %v223
    %255 = vmatprep.subr.mxu0 0.0
    %256 = vmatpush1.msra.mxu0 %v224
    %257 = vmatprep.subr.mxu0 0.0
    %258 = vmatpush1.msra.mxu0 %v225
    %259 = vmatprep.subr.mxu0 0.0
    %260 = vmatpush1.msra.mxu0 %v226
    %261 = vmatprep.subr.mxu0 0.0
    %262 = vmatpush1.msra.mxu0 %v227
    %263 = vmatprep.subr.mxu0 0.0
    %264 = vmatpush1.msra.mxu0 %v228
    %265 = vmatprep.subr.mxu0 0.0
    %266 = vmatpush1.msra.mxu0 %v229
    %267 = vmatprep.subr.mxu0 0.0
    %268 = vmatpush1.msra.mxu0 0.0
    %269 = vmatprep.subr.mxu0 0.0
    %270 = vmatpush1.msra.mxu0 0.0
    %271 = vmatprep.subr.mxu0 0.0
    %272 = vmatpush1.msra.mxu0 0.0
    %273 = vmatprep.subr.mxu0 0.0
    %274 = vmatpush1.msra.mxu0 0.0
    %275 = vmatprep.subr.mxu0 0.0
    %276 = vmatpush1.msra.mxu0 0.0
    %277 = vmatprep.subr.mxu0 0.0
    %278 = vmatpush1.msra.mxu0 0.0
    %279 = vmatprep.subr.mxu0 0.0
    %280 = vmatpush1.msra.mxu0 0.0
    %281 = vmatprep.subr.mxu0 0.0
    %282 = vmatpush1.msra.mxu0 0.0
    %283 = vmatprep.subr.mxu0 0.0
    %284 = vmatpush1.msra.mxu0 0.0
    %285 = vmatprep.subr.mxu0 0.0
    %286 = vmatpush1.msra.mxu0 0.0
    %287 = vmatprep.subr.mxu0 0.0
    %288 = vmatpush1.msra.mxu0 0.0
    %289 = vmatprep.subr.mxu0 0.0
    %290 = vmatpush1.msra.mxu0 0.0
    %291 = vmatprep.subr.mxu0 0.0
    %292 = vmatpush1.msra.mxu0 0.0
    %293 = vmatprep.subr.mxu0 0.0
    %294 = vmatpush1.msra.mxu0 0.0
    %295 = vmatprep.subr.mxu0 0.0
    %296 = vmatpush1.msra.mxu0 0.0
    %297 = vmatprep.subr.mxu0 0.0
    %298 = vmatpush1.msra.mxu0 0.0
    %299 = vmatprep.mubr.f32.mxu0 0.0
    %300 = vmatmul.mubr.f32.gmra.mrb[0].mxu0 %v210
    %v301 = vpop.f32.mrb[0].mxu0
    %v302 = vadd.f32 %v234, %v301
    %v303 = vpop.f32.mrb[0].mxu0
    %304 = vmatprep.mubr.f32.mxu0 0.0
    %305 = vmatmul.mubr.f32.gmra.mrb[0].mxu0 %v211
    %v306 = vpop.f32.mrb[0].mxu0
    %v307 = vadd.f32 %v234, %v306
    %v308 = vpop.f32.mrb[0].mxu0
    %309 = vmatprep.mubr.f32.mxu0 0.0
    %310 = vmatmul.mubr.f32.gmra.mrb[0].mxu0 %v212
    %v311 = vpop.f32.mrb[0].mxu0
    %v312 = vadd.f32 %v234, %v311
    %v313 = vpop.f32.mrb[0].mxu0
    %314 = vmatprep.mubr.f32.mxu0 0.0
    %315 = vmatmul.mubr.f32.gmra.mrb[0].mxu0 %v213
    %v316 = vpop.f32.mrb[0].mxu0
    %v317 = vadd.f32 %v234, %v316
    %v318 = vpop.f32.mrb[0].mxu0
    %319 = vdwg.mxu0
    %vm320 = vcmp.ge.f32.partialorder %v302, 0.0
    %vm321 = vcmp.ge.f32.partialorder %v307, 0.0
    %vm322 = vcmp.ge.f32.partialorder %v312, 0.0
    %vm323 = vcmp.ge.f32.partialorder %v317, 0.0
    %v324 = vmul.f32 %v302, 0.0001
    %v325 = vmul.f32 %v307, 0.0001
    %v326 = vmul.f32 %v312, 0.0001
    %v327 = vmul.f32 %v317, 0.0001
    %v328 = vsel %vm320, %v302, %v324
    %v329 = vsel %vm321, %v307, %v325
    %v330 = vsel %vm322, %v312, %v326
    %v331 = vsel %vm323, %v317, %v327
    %v332 = vld [vmem:[#allocation8] sm:$0xff]
    %v333 = vld [vmem:[#allocation8 + $0x8] sm:$0xff]
    %v334 = vld [vmem:[#allocation8 + $0x10] sm:$0xff]
    %v335 = vld [vmem:[#allocation8 + $0x18] sm:$0xff]
    %v336 = vld [vmem:[#allocation8 + $0x20] sm:$0xff]
    %v337 = vld [vmem:[#allocation8 + $0x28] sm:$0xff]
    %v338 = vld [vmem:[#allocation8 + $0x30] sm:$0xff]
    %v339 = vld [vmem:[#allocation8 + $0x38] sm:$0xff]
    %v340 = vld [vmem:[#allocation8 + $0x40] sm:$0xff]
    %v341 = vld [vmem:[#allocation8 + $0x48] sm:$0xff]
    %v342 = vld [vmem:[#allocation8 + $0x50] sm:$0xff]
    %v343 = vld [vmem:[#allocation8 + $0x58] sm:$0xff]
    %v344 = vld [vmem:[#allocation8 + $0x60] sm:$0xff]
    %v345 = vld [vmem:[#allocation8 + $0x68] sm:$0xff]
    %v346 = vld [vmem:[#allocation8 + $0x70] sm:$0xff]
    %v347 = vld [vmem:[#allocation8 + $0x78] sm:$0xff]
    %v348 = vld [vmem:[%s5 + $0x2] sm:$0x1]
    %v349 = vlaneseq
    %v350 = vshrl.u32 %v349, 7
    %v351 = vsub.s32 0, %v350
    %v352 = vrot.slane %v348, %v351
    %353 = vmatprep.subr.mxu0 0.0
    %354 = vmatpush1.msra.mxu0 %v332
    %355 = vmatprep.subr.mxu0 0.0
    %356 = vmatpush1.msra.mxu0 %v333
    %357 = vmatprep.subr.mxu0 0.0
    %358 = vmatpush1.msra.mxu0 %v334
    %359 = vmatprep.subr.mxu0 0.0
    %360 = vmatpush1.msra.mxu0 %v335
    %361 = vmatprep.subr.mxu0 0.0
    %362 = vmatpush1.msra.mxu0 %v336
    %363 = vmatprep.subr.mxu0 0.0
    %364 = vmatpush1.msra.mxu0 %v337
    %365 = vmatprep.subr.mxu0 0.0
    %366 = vmatpush1.msra.mxu0 %v338
    %367 = vmatprep.subr.mxu0 0.0
    %368 = vmatpush1.msra.mxu0 %v339
    %369 = vmatprep.subr.mxu0 0.0
    %370 = vmatpush1.msra.mxu0 %v340
    %371 = vmatprep.subr.mxu0 0.0
    %372 = vmatpush1.msra.mxu0 %v341
    %373 = vmatprep.subr.mxu0 0.0
    %374 = vmatpush1.msra.mxu0 %v342
    %375 = vmatprep.subr.mxu0 0.0
    %376 = vmatpush1.msra.mxu0 %v343
    %377 = vmatprep.subr.mxu0 0.0
    %378 = vmatpush1.msra.mxu0 %v344
    %379 = vmatprep.subr.mxu0 0.0
    %380 = vmatpush1.msra.mxu0 %v345
    %381 = vmatprep.subr.mxu0 0.0
    %382 = vmatpush1.msra.mxu0 %v346
    %383 = vmatprep.subr.mxu0 0.0
    %384 = vmatpush1.msra.mxu0 %v347
    %385 = vmatprep.subr.mxu0 0.0
    %386 = vmatpush1.msra.mxu0 0.0
    %387 = vmatprep.subr.mxu0 0.0
    %388 = vmatpush1.msra.mxu0 0.0
    %389 = vmatprep.subr.mxu0 0.0
    %390 = vmatpush1.msra.mxu0 0.0
    %391 = vmatprep.subr.mxu0 0.0
    %392 = vmatpush1.msra.mxu0 0.0
    %393 = vmatprep.subr.mxu0 0.0
    %394 = vmatpush1.msra.mxu0 0.0
    %395 = vmatprep.subr.mxu0 0.0
    %396 = vmatpush1.msra.mxu0 0.0
    %397 = vmatprep.subr.mxu0 0.0
    %398 = vmatpush1.msra.mxu0 0.0
    %399 = vmatprep.subr.mxu0 0.0
    %400 = vmatpush1.msra.mxu0 0.0
    %401 = vmatprep.subr.mxu0 0.0
    %402 = vmatpush1.msra.mxu0 0.0
    %403 = vmatprep.subr.mxu0 0.0
    %404 = vmatpush1.msra.mxu0 0.0
    %405 = vmatprep.subr.mxu0 0.0
    %406 = vmatpush1.msra.mxu0 0.0
    %407 = vmatprep.subr.mxu0 0.0
    %408 = vmatpush1.msra.mxu0 0.0
    %409 = vmatprep.subr.mxu0 0.0
    %410 = vmatpush1.msra.mxu0 0.0
    %411 = vmatprep.subr.mxu0 0.0
    %412 = vmatpush1.msra.mxu0 0.0
    %413 = vmatprep.subr.mxu0 0.0
    %414 = vmatpush1.msra.mxu0 0.0
    %415 = vmatprep.subr.mxu0 0.0
    %416 = vmatpush1.msra.mxu0 0.0
    %417 = vmatprep.mubr.f32.mxu0 0.0
    %418 = vmatmul.mubr.f32.gmra.mrb[0].mxu0 %v328
    %v419 = vpop.f32.mrb[0].mxu0
    %v420 = vadd.f32 %v352, %v419
    %v421 = vpop.f32.mrb[0].mxu0
    %422 = vmatprep.mubr.f32.mxu0 0.0
    %423 = vmatmul.mubr.f32.gmra.mrb[0].mxu0 %v329
    %v424 = vpop.f32.mrb[0].mxu0
    %v425 = vadd.f32 %v352, %v424
    %v426 = vpop.f32.mrb[0].mxu0
    %427 = vmatprep.mubr.f32.mxu0 0.0
    %428 = vmatmul.mubr.f32.gmra.mrb[0].mxu0 %v330
    %v429 = vpop.f32.mrb[0].mxu0
    %v430 = vadd.f32 %v352, %v429
    %v431 = vpop.f32.mrb[0].mxu0
    %432 = vmatprep.mubr.f32.mxu0 0.0
    %433 = vmatmul.mubr.f32.gmra.mrb[0].mxu0 %v331
    %v434 = vpop.f32.mrb[0].mxu0
    %v435 = vadd.f32 %v352, %v434
    %v436 = vpop.f32.mrb[0].mxu0
    %437 = vdwg.mxu0
    %vm438 = vcmp.ge.f32.partialorder %v420, 0.0
    %vm439 = vcmp.ge.f32.partialorder %v425, 0.0
    %vm440 = vcmp.ge.f32.partialorder %v430, 0.0
    %vm441 = vcmp.ge.f32.partialorder %v435, 0.0
    %v442 = vmul.f32 %v420, 0.0001
    %v443 = vmul.f32 %v425, 0.0001
    %v444 = vmul.f32 %v430, 0.0001
    %v445 = vmul.f32 %v435, 0.0001
    %v446 = vsel %vm438, %v420, %v442
    %v447 = vsel %vm439, %v425, %v443
    %v448 = vsel %vm440, %v430, %v444
    %v449 = vsel %vm441, %v435, %v445
    %v450 = vld [vmem:[#allocation10] sm:$0xff]
    %v451 = vld [vmem:[#allocation10 + $0x8] sm:$0xff]
    %v452 = vld [vmem:[#allocation10 + $0x10] sm:$0xff]
    %v453 = vld [vmem:[#allocation10 + $0x18] sm:$0xff]
    %v454 = vld [vmem:[#allocation10 + $0x20] sm:$0xff]
    %v455 = vld [vmem:[#allocation10 + $0x28] sm:$0xff]
    %v456 = vld [vmem:[#allocation10 + $0x30] sm:$0xff]
    %v457 = vld [vmem:[#allocation10 + $0x38] sm:$0xff]
    %v458 = vld [vmem:[#allocation10 + $0x40] sm:$0xff]
    %v459 = vld [vmem:[#allocation10 + $0x48] sm:$0xff]
    %v460 = vld [vmem:[#allocation10 + $0x50] sm:$0xff]
    %v461 = vld [vmem:[#allocation10 + $0x58] sm:$0xff]
    %v462 = vld [vmem:[#allocation10 + $0x60] sm:$0xff]
    %v463 = vld [vmem:[#allocation10 + $0x68] sm:$0xff]
    %v464 = vld [vmem:[#allocation10 + $0x70] sm:$0xff]
    %v465 = vld [vmem:[#allocation10 + $0x78] sm:$0xff]
    %v466 = vld [vmem:[%s5 + $0x3] sm:$0x1]
    %v467 = vlaneseq
    %v468 = vshrl.u32 %v467, 7
    %v469 = vsub.s32 0, %v468
    %v470 = vrot.slane %v466, %v469
    %471 = vmatprep.subr.mxu0 0.0
    %472 = vmatpush1.msra.mxu0 %v450
    %473 = vmatprep.subr.mxu0 0.0
    %474 = vmatpush1.msra.mxu0 %v451
    %475 = vmatprep.subr.mxu0 0.0
    %476 = vmatpush1.msra.mxu0 %v452
    %477 = vmatprep.subr.mxu0 0.0
    %478 = vmatpush1.msra.mxu0 %v453
    %479 = vmatprep.subr.mxu0 0.0
    %480 = vmatpush1.msra.mxu0 %v454
    %481 = vmatprep.subr.mxu0 0.0
    %482 = vmatpush1.msra.mxu0 %v455
    %483 = vmatprep.subr.mxu0 0.0
    %484 = vmatpush1.msra.mxu0 %v456
    %485 = vmatprep.subr.mxu0 0.0
    %486 = vmatpush1.msra.mxu0 %v457
    %487 = vmatprep.subr.mxu0 0.0
    %488 = vmatpush1.msra.mxu0 %v458
    %489 = vmatprep.subr.mxu0 0.0
    %490 = vmatpush1.msra.mxu0 %v459
    %491 = vmatprep.subr.mxu0 0.0
    %492 = vmatpush1.msra.mxu0 %v460
    %493 = vmatprep.subr.mxu0 0.0
    %494 = vmatpush1.msra.mxu0 %v461
    %495 = vmatprep.subr.mxu0 0.0
    %496 = vmatpush1.msra.mxu0 %v462
    %497 = vmatprep.subr.mxu0 0.0
    %498 = vmatpush1.msra.mxu0 %v463
    %499 = vmatprep.subr.mxu0 0.0
    %500 = vmatpush1.msra.mxu0 %v464
    %501 = vmatprep.subr.mxu0 0.0
    %502 = vmatpush1.msra.mxu0 %v465
    %503 = vmatprep.subr.mxu0 0.0
    %504 = vmatpush1.msra.mxu0 0.0
    %505 = vmatprep.subr.mxu0 0.0
    %506 = vmatpush1.msra.mxu0 0.0
    %507 = vmatprep.subr.mxu0 0.0
    %508 = vmatpush1.msra.mxu0 0.0
    %509 = vmatprep.subr.mxu0 0.0
    %510 = vmatpush1.msra.mxu0 0.0
    %511 = vmatprep.subr.mxu0 0.0
    %512 = vmatpush1.msra.mxu0 0.0
    %513 = vmatprep.subr.mxu0 0.0
    %514 = vmatpush1.msra.mxu0 0.0
    %515 = vmatprep.subr.mxu0 0.0
    %516 = vmatpush1.msra.mxu0 0.0
    %517 = vmatprep.subr.mxu0 0.0
    %518 = vmatpush1.msra.mxu0 0.0
    %519 = vmatprep.subr.mxu0 0.0
    %520 = vmatpush1.msra.mxu0 0.0
    %521 = vmatprep.subr.mxu0 0.0
    %522 = vmatpush1.msra.mxu0 0.0
    %523 = vmatprep.subr.mxu0 0.0
    %524 = vmatpush1.msra.mxu0 0.0
    %525 = vmatprep.subr.mxu0 0.0
    %526 = vmatpush1.msra.mxu0 0.0
    %527 = vmatprep.subr.mxu0 0.0
    %528 = vmatpush1.msra.mxu0 0.0
    %529 = vmatprep.subr.mxu0 0.0
    %530 = vmatpush1.msra.mxu0 0.0
    %531 = vmatprep.subr.mxu0 0.0
    %532 = vmatpush1.msra.mxu0 0.0
    %533 = vmatprep.subr.mxu0 0.0
    %534 = vmatpush1.msra.mxu0 0.0
    %535 = vmatprep.mubr.f32.mxu0 0.0
    %536 = vmatmul.mubr.f32.gmra.mrb[0].mxu0 %v446
    %v537 = vpop.f32.mrb[0].mxu0
    %v538 = vadd.f32 %v470, %v537
    %v539 = vpop.f32.mrb[0].mxu0
    %540 = vmatprep.mubr.f32.mxu0 0.0
    %541 = vmatmul.mubr.f32.gmra.mrb[0].mxu0 %v447
    %v542 = vpop.f32.mrb[0].mxu0
    %v543 = vadd.f32 %v470, %v542
    %v544 = vpop.f32.mrb[0].mxu0
    %545 = vmatprep.mubr.f32.mxu0 0.0
    %546 = vmatmul.mubr.f32.gmra.mrb[0].mxu0 %v448
    %v547 = vpop.f32.mrb[0].mxu0
    %v548 = vadd.f32 %v470, %v547
    %v549 = vpop.f32.mrb[0].mxu0
    %550 = vmatprep.mubr.f32.mxu0 0.0
    %551 = vmatmul.mubr.f32.gmra.mrb[0].mxu0 %v449
    %v552 = vpop.f32.mrb[0].mxu0
    %v553 = vadd.f32 %v470, %v552
    %v554 = vpop.f32.mrb[0].mxu0
    %555 = vdwg.mxu0
    %556 = vst [vmem:[#allocation11] sm:$0xff] %v538
    %557 = vst [vmem:[#allocation11 + $0x8] sm:$0xff] %v543
    %558 = vst [vmem:[#allocation11 + $0x10] sm:$0xff] %v548
    %559 = vst [vmem:[#allocation11 + $0x18] sm:$0xff] %v553
    // Predicated region
    $region46: #{tpu_custom_call.1} parent=1 // pred_check
      _
    $region47: #{tpu_custom_call.1} parent=1 // pred_check_branch
      %561 = sbr.rel (0) target = $region49
    $region48: #{tpu_custom_call.1} parent=1 // pred_region
      %s563 = ssub.s32 512, 512
      %564 = vsyncadd [#allocation4], %s563
      %s565 = sshll.u32 [#allocation11], 4
      %s566 = int_to_ptr.vmem [resolvable:$true] %s565
      %571 = dma.vmem_to_hbm [thread:$0]  %s566, 512, %s6, [#allocation4], 128, 128, 8
    $region49: #{tpu_custom_call.1} parent=1 // pred_fallthru
      _
    // Predicated region
    $region50: #{tpu_custom_call.1} parent=1 // pred_check
      _
    $region51: #{tpu_custom_call.1} parent=1 // pred_check_branch
      %573 = sbr.rel (0) target = $region53
    $region52: #{tpu_custom_call.1} parent=1 // pred_region
      %574 = dma.done [#allocation4], 512
    $region53: #{tpu_custom_call.1} parent=1 // pred_fallthru
      _
    %575 = vsyncpa [#allocation3], 1
    %576 = vsyncpa [#allocation6], 1
    %577 = vsyncpa [#allocation9], 1
    %578 = vsyncpa [#allocation4], 1

</llo_original>
